<compile_context>
chip_gen: v7x
topology: tpu7x:2x2x1
jax: 0.10.0
libtpu: 0.0.40
codegen_flags: <defaults>
</compile_context>

<pallas_src>
import functools

import jax
import jax.numpy as jnp
from jax import lax
from jax.experimental import pallas as pl
from jax.experimental.pallas import tpu as pltpu


def _flash_mha_kernel(*refs, heads, head_width, has_mask, kv_pad, skv_total):
    """One grid step = (batch b, query tile qi, kv tile ki).

    Online (flash-style) softmax over the kv grid axis; all heads handled per
    step.  Scratch persists across the kv axis:
      m_sc   (heads, tq, 1) f32 : running row max per head
      l_sc   (heads, tq, 1) f32 : running softmax denominator per head
      acc_sc (tq, heads*hw) f32 : running un-normalized PV slab
    """
    if has_mask:
        (qh_ref, kh_ref, vh_ref, mask_ref, wo_ref, bo_ref, out_ref,
         m_sc, l_sc, acc_sc) = refs
    else:
        (qh_ref, kh_ref, vh_ref, wo_ref, bo_ref, out_ref,
         m_sc, l_sc, acc_sc) = refs
        mask_ref = None

    ki = pl.program_id(2)
    nkv = pl.num_programs(2)
    cdt = qh_ref.dtype            # MXU input dtype; accumulation stays f32.
    tkv = kh_ref.shape[0]

    @pl.when(ki == 0)
    def _():
        m_sc[...] = jnp.full(m_sc.shape, -jnp.inf, jnp.float32)
        l_sc[...] = jnp.zeros(l_sc.shape, jnp.float32)
        acc_sc[...] = jnp.zeros(acc_sc.shape, jnp.float32)

    qh = qh_ref[...]              # (tq, heads*hw) -- same block across ki
    kh = kh_ref[...]              # (tkv, heads*hw)
    vh = vh_ref[...]              # (tkv, heads*hw)

    if has_mask:
        masked = mask_ref[...] != 0                    # (tq, tkv), True == masked
    if kv_pad:
        # Padded tail of the rounded-up content axis: exclude exactly.
        col = ki * tkv + lax.broadcasted_iota(jnp.int32, (1, tkv), 1)
        pad_cols = col >= skv_total                    # (1, tkv)

    # TODO(synk): when head_width < 128 the per-head lane slices are not
    # 128-aligned; padding head_width to 128 in the fused projections is a
    # possible further MXU/layout win (measure the trade).
    for h in range(heads):
        sl = slice(h * head_width, (h + 1) * head_width)
        # logits[q, k] = sum_d qh[q, d] * kh[k, d]   (no explicit K^T relayout)
        s = lax.dot_general(qh[:, sl], kh[:, sl], (((1,), (1,)), ((), ())),
                            preferred_element_type=jnp.float32)
        if has_mask:
            s = jnp.where(masked, -100000000.0, s)     # matches reference fill
        if kv_pad:
            s = jnp.where(pad_cols, -1e30, s)          # exp underflows to 0

        m_prev = m_sc[h]                               # (tq, 1)
        m_new = jnp.maximum(m_prev, jnp.max(s, axis=-1, keepdims=True))
        alpha = jnp.exp(m_prev - m_new)
        # TODO(synk): on v6e/v7x, casting (s - m_new) to bf16 before exp would
        # double EUP throughput (keep f32 on v5e).
        p = jnp.exp(s - m_new)                         # (tq, tkv) f32
        l_sc[h] = alpha * l_sc[h] + jnp.sum(p, axis=-1, keepdims=True)
        acc_sc[:, sl] = alpha * acc_sc[:, sl] + jnp.dot(
            p.astype(cdt), vh[:, sl], preferred_element_type=jnp.float32)
        m_sc[h] = m_new

    @pl.when(ki == nkv - 1)
    def _():
        # Normalize each head in place (approx reciprocal -> EUP slot), then
        # collapse the lane-dense slab with one wide matmul.  The reference's
        # post-V 1/sqrt(head_width) is already folded into wo by the wrapper.
        for h in range(heads):
            sl = slice(h * head_width, (h + 1) * head_width)
            acc_sc[:, sl] = acc_sc[:, sl] * pl.reciprocal(l_sc[h], approx=True)
        slab = acc_sc[...].astype(cdt)
        out = (jnp.dot(slab, wo_ref[...], preferred_element_type=jnp.float32)
               + bo_ref[...])
        out_ref[...] = out.astype(out_ref.dtype)


def _round_up(x, m):
    return ((x + m - 1) // m) * m


def _tile_axis(n, target):
    """Return (tile, padded_n): a single 8-aligned tile when n <= target, else
    balanced 128-aligned tiles (keeps every BlockSpec dim legal for the
    f32/bf16/int8 operands regardless of n)."""
    if n <= target:
        t = _round_up(n, 8)
        return t, t
    nt = -(-n // target)                 # number of tiles
    t = _round_up(-(-n // nt), 128)      # balanced, 128-aligned
    return t, t * nt


def _vmem_capacity_bytes():
    try:
        return int(pltpu.get_tpu_info().vmem_capacity_bytes)
    except Exception:
        return 64 * 1024 * 1024          # conservative (v7x-sized) fallback


def multi_headed_attention(query, key, value, params, *, heads, mask=None,
                           compute_dtype=None, out_dtype=None):
    """query: (B, items, d_query); key/value: (B, content_items, d_content);
    mask: optional bool (B, items, content_items), True == masked."""
    B, items, d_query = query.shape
    _, content_items, d_content = key.shape
    assert d_query % heads == 0
    head_width = d_query // heads
    d_inner = heads * head_width
    d_output = params["wo"].shape[-1]

    cdt = query.dtype if compute_dtype is None else compute_dtype
    odt = query.dtype if out_dtype is None else out_dtype

    # --- Q/K/V projections hoisted out of the attention kernel --------------
    # (Recomputing K/V inside the kernel repeated them once per query tile;
    # here each projection runs exactly once, as a plain XLA matmul.)
    def _proj(x, w, b):
        y = jnp.einsum("bsi,ij->bsj", x.astype(cdt), w.astype(cdt),
                       preferred_element_type=jnp.float32)
        return (y + b.astype(jnp.float32)).astype(cdt)

    qh = _proj(query, params["wq"], params["bq"])      # (B, items, d_inner)
    kh = _proj(key, params["wk"], params["bk"])        # (B, skv,   d_inner)
    vh = _proj(value, params["wv"], params["bv"])      # (B, skv,   d_inner)

    # Fold the reference's post-V 1/sqrt(head_width) scaling into Wo.
    inv_sqrt_hw = 1.0 / float(head_width) ** 0.5
    wo = (params["wo"] * inv_sqrt_hw).astype(cdt)            # (d_inner, d_out)
    bo = params["bo"].reshape(1, d_output).astype(jnp.float32)

    # --- generation-aware tiling / VMEM budget -------------------------------
    cap = _vmem_capacity_bytes()
    tq_target = 512 if cap >= (96 << 20) else 256      # smaller q tiles on 64 MiB VMEM
    tkv_target = 512
    vmem_limit = max(32 << 20, min(cap - (12 << 20), 100 << 20))

    tq, items_p = _tile_axis(items, tq_target)
    tkv, skv_p = _tile_axis(content_items, tkv_target)
    nq = items_p // tq
    nkv = skv_p // tkv
    kv_pad = skv_p != content_items

    if items_p != items:
        qh = jnp.pad(qh, ((0, 0), (0, items_p - items), (0, 0)))
    if skv_p != content_items:
        kh = jnp.pad(kh, ((0, 0), (0, skv_p - content_items), (0, 0)))
        vh = jnp.pad(vh, ((0, 0), (0, skv_p - content_items), (0, 0)))

    has_mask = mask is not None
    in_specs = [
        pl.BlockSpec((None, tq, d_inner), lambda b, qi, ki: (b, qi, 0)),
        pl.BlockSpec((None, tkv, d_inner), lambda b, qi, ki: (b, ki, 0)),
        pl.BlockSpec((None, tkv, d_inner), lambda b, qi, ki: (b, ki, 0)),
    ]
    args = [qh, kh, vh]
    if has_mask:
        # TODO(synk): for structured (e.g. causal) masks, generate the mask
        # in-kernel from broadcasted_iota instead of streaming it from HBM.
        mask_i8 = mask.astype(jnp.int8)
        if items_p != items or skv_p != content_items:
            mask_i8 = jnp.pad(mask_i8, ((0, 0), (0, items_p - items),
                                        (0, skv_p - content_items)))
        in_specs.append(
            pl.BlockSpec((None, tq, tkv), lambda b, qi, ki: (b, qi, ki)))
        args.append(mask_i8)

    # Collapse weights: constant index_map -> DMA'd once, resident in VMEM.
    in_specs += [
        pl.BlockSpec((d_inner, d_output), lambda b, qi, ki: (0, 0)),
        pl.BlockSpec((1, d_output), lambda b, qi, ki: (0, 0)),
    ]
    args += [wo, bo]

    kernel = functools.partial(
        _flash_mha_kernel, heads=heads, head_width=head_width,
        has_mask=has_mask, kv_pad=kv_pad, skv_total=content_items)

    grid_spec = pltpu.PrefetchScalarGridSpec(
        num_scalar_prefetch=0,
        grid=(B, nq, nkv),
        in_specs=in_specs,
        out_specs=pl.BlockSpec((None, tq, d_output),
                               lambda b, qi, ki: (b, qi, 0)),
        scratch_shapes=[pltpu.VMEM((heads, tq, 1), jnp.float32),
                        pltpu.VMEM((heads, tq, 1), jnp.float32),
                        pltpu.VMEM((tq, d_inner), jnp.float32)],
    )

    out = pl.pallas_call(
        kernel,
        out_shape=jax.ShapeDtypeStruct((B, items_p, d_output), odt),
        grid_spec=grid_spec,
        compiler_params=pltpu.CompilerParams(
            # kv axis accumulates into resident scratch -> "arbitrary";
            # batch / query-tile axes may shard across TensorCores.
            dimension_semantics=("parallel", "parallel", "arbitrary"),
            vmem_limit_bytes=int(vmem_limit)),
    )(*args)

    if items_p != items:
        out = out[:, :items, :]
    return out


def _reference(query, key, value, params, *, heads, mask=None):
    """Pure-JAX mirror of the PyTorch forward (non-ensemble path)."""
    B, items, d_query = query.shape
    hw = d_query // heads
    Q = query @ params["wq"] + params["bq"]
    K = key @ params["wk"] + params["bk"]
    V = value @ params["wv"] + params["bv"]
    Q = Q.reshape(B, items, heads, hw).transpose(0, 2, 1, 3)
    K = K.reshape(B, -1, heads, hw).transpose(0, 2, 1, 3)
    V = V.reshape(B, -1, heads, hw).transpose(0, 2, 1, 3)
    logits = jnp.einsum("bhqd,bhkd->bhqk", Q, K)
    if mask is not None:
        logits = jnp.where(mask[:, None, :, :], -100000000.0, logits)
    score = jax.nn.softmax(logits, axis=-1)
    attn = jnp.einsum("bhqk,bhkd->bhqd", score, V) / jnp.sqrt(jnp.float32(hw))
    attn = attn.transpose(0, 2, 1, 3).reshape(B, items, heads * hw)
    return attn @ params["wo"] + params["bo"]


if __name__ == "__main__":
    B, items, content_items = 2, 8, 8
    d_query, d_content, d_output, heads = 32, 24, 16, 4
    head_width = d_query // heads

    root = jax.random.PRNGKey(0)
    ks = jax.random.split(root, 16)

    query = jax.random.normal(ks[0], (B, items, d_query), jnp.float32)
    key = jax.random.normal(ks[1], (B, content_items, d_content), jnp.float32)
    value = jax.random.normal(ks[2], (B, content_items, d_content), jnp.float32)

    def w_init(k, shape):
        return jax.random.normal(k, shape, jnp.float32) / jnp.sqrt(jnp.float32(shape[0]))

    params = {
        "wq": w_init(ks[3], (d_query, heads * head_width)),
        "bq": 0.01 * jax.random.normal(ks[4], (heads * head_width,), jnp.float32),
        "wk": w_init(ks[5], (d_content, heads * head_width)),
        "bk": 0.01 * jax.random.normal(ks[6], (heads * head_width,), jnp.float32),
        "wv": w_init(ks[7], (d_content, heads * head_width)),
        "bv": 0.01 * jax.random.normal(ks[8], (heads * head_width,), jnp.float32),
        "wo": w_init(ks[9], (heads * head_width, d_output)),
        "bo": 0.01 * jax.random.normal(ks[10], (d_output,), jnp.float32),
    }

    # 1) No mask (mask input is statically omitted from the kernel).
    out = multi_headed_attention(query, key, value, params, heads=heads)
    out = jax.block_until_ready(out)
    ref = _reference(query, key, value, params, heads=heads)
    assert out.shape == (B, items, d_output)
    assert jnp.allclose(out, ref, atol=2e-3, rtol=2e-3), "mismatch (no mask)"

    # 2) Causal-style boolean mask (True == masked), streamed as int8 tiles.
    mask = jnp.triu(jnp.ones((items, content_items), bool), k=1)
    mask = jnp.broadcast_to(mask, (B, items, content_items))
    out_m = multi_headed_attention(query, key, value, params, heads=heads, mask=mask)
    out_m = jax.block_until_ready(out_m)
    ref_m = _reference(query, key, value, params, heads=heads, mask=mask)
    assert jnp.allclose(out_m, ref_m, atol=2e-3, rtol=2e-3), "mismatch (mask)"

    # 3) bfloat16 compute path (f32 accumulation) -- loose tolerance check.
    out_bf = multi_headed_attention(query, key, value, params, heads=heads,
                                    mask=mask, compute_dtype=jnp.bfloat16)
    out_bf = jax.block_until_ready(out_bf)
    assert out_bf.shape == (B, items, d_output)
    assert jnp.allclose(out_bf, ref_m, atol=5e-2, rtol=5e-2), "mismatch (bf16)"

    # 4) Non-divisible shapes: exercises q-tile padding and in-kernel masking
    #    of the padded kv tail.
    items2, skv2 = 20, 15
    q2 = jax.random.normal(ks[11], (B, items2, d_query), jnp.float32)
    k2 = jax.random.normal(ks[12], (B, skv2, d_content), jnp.float32)
    v2 = jax.random.normal(ks[13], (B, skv2, d_content), jnp.float32)
    m2 = jax.random.bernoulli(ks[14], 0.3, (B, items2, skv2))
    out2 = multi_headed_attention(q2, k2, v2, params, heads=heads, mask=m2)
    out2 = jax.block_until_ready(out2)
    ref2 = _reference(q2, k2, v2, params, heads=heads, mask=m2)
    assert out2.shape == (B, items2, d_output)
    assert jnp.allclose(out2, ref2, atol=2e-3, rtol=2e-3), "mismatch (padded shapes)"

    print("KERNEL_OK")
</pallas_src>

<mosaic_0001>
module attributes {stable_mosaic.version = 11 : i64} {
  func.func @_flash_mha_kernel(%arg0: i32, %arg1: i32, %arg2: i32, %arg3: memref<1x8x32xf32, #tpu.memory_space<vmem>>, %arg4: memref<1x8x32xf32, #tpu.memory_space<vmem>>, %arg5: memref<1x8x32xf32, #tpu.memory_space<vmem>>, %arg6: memref<32x16xf32, #tpu.memory_space<vmem>>, %arg7: memref<1x16xf32, #tpu.memory_space<vmem>>, %arg8: memref<1x8x16xf32, #tpu.memory_space<vmem>>, %arg9: memref<4x8x1xf32, #tpu.memory_space<vmem>>, %arg10: memref<4x8x1xf32, #tpu.memory_space<vmem>>, %arg11: memref<8x32xf32, #tpu.memory_space<vmem>>) attributes {dimension_semantics = [#tpu.dimension_semantics<parallel>, #tpu.dimension_semantics<parallel>, #tpu.dimension_semantics<arbitrary>], iteration_bounds = array<i64: 2, 1, 1>, scalar_prefetch = 0 : i64, scratch_operands = 3 : i64, tpu.core_type = #tpu.core_type<tc>, window_params = [{transform_indices = @transform_0, window_bounds = array<i64: 1, 8, 32>}, {transform_indices = @transform_1, window_bounds = array<i64: 1, 8, 32>}, {transform_indices = @transform_2, window_bounds = array<i64: 1, 8, 32>}, {pipeline_mode = #tpu.pipeline_mode<synchronous>, transform_indices = @transform_3, window_bounds = array<i64: 32, 16>}, {pipeline_mode = #tpu.pipeline_mode<synchronous>, transform_indices = @transform_4, window_bounds = array<i64: 1, 16>}, {transform_indices = @transform_5, window_bounds = array<i64: 1, 8, 16>}]} {
    %c0_i32 = arith.constant 0 : i32
    %0 = arith.cmpi eq, %arg2, %c0_i32 : i32
    %1 = arith.extui %0 : i1 to i32
    %c0_i32_0 = arith.constant 0 : i32
    %2 = arith.cmpi ne, %1, %c0_i32_0 : i32
    scf.if %2 {
      %cst_84 = arith.constant 0xFF800000 : f32
      %140 = vector.broadcast %cst_84 : f32 to vector<4x8x1xf32>
      %c0_85 = arith.constant 0 : index
      %c0_86 = arith.constant 0 : index
      %c0_87 = arith.constant 0 : index
      %141 = vector.load %arg9[%c0_85, %c0_86, %c0_87] : memref<4x8x1xf32, #tpu.memory_space<vmem>>, vector<4x8x1xf32>
      tpu.vector_store %arg9[%c0_85, %c0_86, %c0_87], %140 {strides = array<i32>} : memref<4x8x1xf32, #tpu.memory_space<vmem>>, vector<4x8x1xf32>,
      %cst_88 = arith.constant 0.000000e+00 : f32
      %142 = vector.broadcast %cst_88 : f32 to vector<4x8x1xf32>
      %c0_89 = arith.constant 0 : index
      %c0_90 = arith.constant 0 : index
      %c0_91 = arith.constant 0 : index
      %143 = vector.load %arg10[%c0_89, %c0_90, %c0_91] : memref<4x8x1xf32, #tpu.memory_space<vmem>>, vector<4x8x1xf32>
      tpu.vector_store %arg10[%c0_89, %c0_90, %c0_91], %142 {strides = array<i32>} : memref<4x8x1xf32, #tpu.memory_space<vmem>>, vector<4x8x1xf32>,
      %cst_92 = arith.constant 0.000000e+00 : f32
      %144 = vector.broadcast %cst_92 : f32 to vector<8x32xf32>
      %c0_93 = arith.constant 0 : index
      %c0_94 = arith.constant 0 : index
      %145 = vector.load %arg11[%c0_93, %c0_94] : memref<8x32xf32, #tpu.memory_space<vmem>>, vector<8x32xf32>
      tpu.vector_store %arg11[%c0_93, %c0_94], %144 {strides = array<i32>} : memref<8x32xf32, #tpu.memory_space<vmem>>, vector<8x32xf32>,
    } else {
    }
    %c0 = arith.constant 0 : index
    %c0_1 = arith.constant 0 : index
    %c0_2 = arith.constant 0 : index
    %3 = vector.load %arg3[%c0, %c0_1, %c0_2] : memref<1x8x32xf32, #tpu.memory_space<vmem>>, vector<1x8x32xf32>
    %4 = vector.shape_cast %3 : vector<1x8x32xf32> to vector<8x32xf32>
    %c0_3 = arith.constant 0 : index
    %c0_4 = arith.constant 0 : index
    %c0_5 = arith.constant 0 : index
    %5 = vector.load %arg4[%c0_3, %c0_4, %c0_5] : memref<1x8x32xf32, #tpu.memory_space<vmem>>, vector<1x8x32xf32>
    %6 = vector.shape_cast %5 : vector<1x8x32xf32> to vector<8x32xf32>
    %c0_6 = arith.constant 0 : index
    %c0_7 = arith.constant 0 : index
    %c0_8 = arith.constant 0 : index
    %7 = vector.load %arg5[%c0_6, %c0_7, %c0_8] : memref<1x8x32xf32, #tpu.memory_space<vmem>>, vector<1x8x32xf32>
    %8 = vector.shape_cast %7 : vector<1x8x32xf32> to vector<8x32xf32>
    %9 = vector.extract_strided_slice %4 {offsets = [0, 0], sizes = [8, 8], strides = [1, 1]} : vector<8x32xf32> to vector<8x8xf32>
    %10 = vector.extract_strided_slice %6 {offsets = [0, 0], sizes = [8, 8], strides = [1, 1]} : vector<8x32xf32> to vector<8x8xf32>
    %cst = arith.constant dense<0.000000e+00> : vector<8x8xf32>
    %11 = tpu.matmul %9, %10, %cst {dimension_numbers = #tpu.dot_dimension_numbers<[1], [1], [0], [0], [0, 0, 1, 0], [], []>} : vector<8x8xf32>, vector<8x8xf32>, vector<8x8xf32> -> vector<8x8xf32>
    %c0_9 = arith.constant 0 : index
    %c0_10 = arith.constant 0 : index
    %c0_11 = arith.constant 0 : index
    %12 = vector.load %arg9[%c0_9, %c0_10, %c0_11] : memref<4x8x1xf32, #tpu.memory_space<vmem>>, vector<1x8x1xf32>
    %13 = vector.shape_cast %12 : vector<1x8x1xf32> to vector<8x1xf32>
    %cst_12 = arith.constant dense<0xFF800000> : vector<8xf32>
    %14 = vector.multi_reduction <maximumf>, %11, %cst_12 [1] : vector<8x8xf32> to vector<8xf32>
    %15 = vector.shape_cast %14 : vector<8xf32> to vector<8x1xf32>
    %16 = arith.maximumf %13, %15 : vector<8x1xf32>
    %17 = arith.subf %13, %16 : vector<8x1xf32>
    %18 = math.exp %17 : vector<8x1xf32>
    %19 = vector.broadcast %16 : vector<8x1xf32> to vector<8x8xf32>
    %20 = arith.subf %11, %19 : vector<8x8xf32>
    %21 = math.exp %20 : vector<8x8xf32>
    %c0_13 = arith.constant 0 : index
    %c0_14 = arith.constant 0 : index
    %c0_15 = arith.constant 0 : index
    %22 = vector.load %arg10[%c0_13, %c0_14, %c0_15] : memref<4x8x1xf32, #tpu.memory_space<vmem>>, vector<1x8x1xf32>
    %23 = vector.shape_cast %22 : vector<1x8x1xf32> to vector<8x1xf32>
    %24 = arith.mulf %18, %23 : vector<8x1xf32>
    %cst_16 = arith.constant dense<0.000000e+00> : vector<8xf32>
    %25 = vector.multi_reduction <add>, %21, %cst_16 [1] : vector<8x8xf32> to vector<8xf32>
    %26 = vector.shape_cast %25 : vector<8xf32> to vector<8x1xf32>
    %27 = arith.addf %24, %26 : vector<8x1xf32>
    %c0_17 = arith.constant 0 : index
    %c0_18 = arith.constant 0 : index
    %c0_19 = arith.constant 0 : index
    %28 = vector.load %arg10[%c0_17, %c0_18, %c0_19] : memref<4x8x1xf32, #tpu.memory_space<vmem>>, vector<1x8x1xf32>
    %29 = vector.shape_cast %28 : vector<1x8x1xf32> to vector<8x1xf32>
    %30 = vector.shape_cast %27 : vector<8x1xf32> to vector<1x8x1xf32>
    tpu.vector_store %arg10[%c0_17, %c0_18, %c0_19], %30 {strides = array<i32>} : memref<4x8x1xf32, #tpu.memory_space<vmem>>, vector<1x8x1xf32>,
    %c0_20 = arith.constant 0 : index
    %c0_21 = arith.constant 0 : index
    %31 = vector.load %arg11[%c0_20, %c0_21] : memref<8x32xf32, #tpu.memory_space<vmem>>, vector<8x8xf32>
    %32 = vector.broadcast %18 : vector<8x1xf32> to vector<8x8xf32>
    %33 = arith.mulf %32, %31 : vector<8x8xf32>
    %34 = vector.extract_strided_slice %8 {offsets = [0, 0], sizes = [8, 8], strides = [1, 1]} : vector<8x32xf32> to vector<8x8xf32>
    %cst_22 = arith.constant dense<0.000000e+00> : vector<8x8xf32>
    %35 = tpu.matmul %21, %34, %cst_22 {dimension_numbers = #tpu.dot_dimension_numbers<[1], [0], [0], [1], [0, 0, 1, 1], [], []>} : vector<8x8xf32>, vector<8x8xf32>, vector<8x8xf32> -> vector<8x8xf32>
    %36 = arith.addf %33, %35 : vector<8x8xf32>
    %c0_23 = arith.constant 0 : index
    %c0_24 = arith.constant 0 : index
    %37 = vector.load %arg11[%c0_23, %c0_24] : memref<8x32xf32, #tpu.memory_space<vmem>>, vector<8x8xf32>
    tpu.vector_store %arg11[%c0_23, %c0_24], %36 {strides = array<i32>} : memref<8x32xf32, #tpu.memory_space<vmem>>, vector<8x8xf32>,
    %c0_25 = arith.constant 0 : index
    %c0_26 = arith.constant 0 : index
    %c0_27 = arith.constant 0 : index
    %38 = vector.load %arg9[%c0_25, %c0_26, %c0_27] : memref<4x8x1xf32, #tpu.memory_space<vmem>>, vector<1x8x1xf32>
    %39 = vector.shape_cast %38 : vector<1x8x1xf32> to vector<8x1xf32>
    %40 = vector.shape_cast %16 : vector<8x1xf32> to vector<1x8x1xf32>
    tpu.vector_store %arg9[%c0_25, %c0_26, %c0_27], %40 {strides = array<i32>} : memref<4x8x1xf32, #tpu.memory_space<vmem>>, vector<1x8x1xf32>,
    %41 = vector.extract_strided_slice %4 {offsets = [0, 8], sizes = [8, 8], strides = [1, 1]} : vector<8x32xf32> to vector<8x8xf32>
    %42 = vector.extract_strided_slice %6 {offsets = [0, 8], sizes = [8, 8], strides = [1, 1]} : vector<8x32xf32> to vector<8x8xf32>
    %cst_28 = arith.constant dense<0.000000e+00> : vector<8x8xf32>
    %43 = tpu.matmul %41, %42, %cst_28 {dimension_numbers = #tpu.dot_dimension_numbers<[1], [1], [0], [0], [0, 0, 1, 0], [], []>} : vector<8x8xf32>, vector<8x8xf32>, vector<8x8xf32> -> vector<8x8xf32>
    %c1 = arith.constant 1 : index
    %c0_29 = arith.constant 0 : index
    %c0_30 = arith.constant 0 : index
    %44 = vector.load %arg9[%c1, %c0_29, %c0_30] : memref<4x8x1xf32, #tpu.memory_space<vmem>>, vector<1x8x1xf32>
    %45 = vector.shape_cast %44 : vector<1x8x1xf32> to vector<8x1xf32>
    %cst_31 = arith.constant dense<0xFF800000> : vector<8xf32>
    %46 = vector.multi_reduction <maximumf>, %43, %cst_31 [1] : vector<8x8xf32> to vector<8xf32>
    %47 = vector.shape_cast %46 : vector<8xf32> to vector<8x1xf32>
    %48 = arith.maximumf %45, %47 : vector<8x1xf32>
    %49 = arith.subf %45, %48 : vector<8x1xf32>
    %50 = math.exp %49 : vector<8x1xf32>
    %51 = vector.broadcast %48 : vector<8x1xf32> to vector<8x8xf32>
    %52 = arith.subf %43, %51 : vector<8x8xf32>
    %53 = math.exp %52 : vector<8x8xf32>
    %c1_32 = arith.constant 1 : index
    %c0_33 = arith.constant 0 : index
    %c0_34 = arith.constant 0 : index
    %54 = vector.load %arg10[%c1_32, %c0_33, %c0_34] : memref<4x8x1xf32, #tpu.memory_space<vmem>>, vector<1x8x1xf32>
    %55 = vector.shape_cast %54 : vector<1x8x1xf32> to vector<8x1xf32>
    %56 = arith.mulf %50, %55 : vector<8x1xf32>
    %cst_35 = arith.constant dense<0.000000e+00> : vector<8xf32>
    %57 = vector.multi_reduction <add>, %53, %cst_35 [1] : vector<8x8xf32> to vector<8xf32>
    %58 = vector.shape_cast %57 : vector<8xf32> to vector<8x1xf32>
    %59 = arith.addf %56, %58 : vector<8x1xf32>
    %c1_36 = arith.constant 1 : index
    %c0_37 = arith.constant 0 : index
    %c0_38 = arith.constant 0 : index
    %60 = vector.load %arg10[%c1_36, %c0_37, %c0_38] : memref<4x8x1xf32, #tpu.memory_space<vmem>>, vector<1x8x1xf32>
    %61 = vector.shape_cast %60 : vector<1x8x1xf32> to vector<8x1xf32>
    %62 = vector.shape_cast %59 : vector<8x1xf32> to vector<1x8x1xf32>
    tpu.vector_store %arg10[%c1_36, %c0_37, %c0_38], %62 {strides = array<i32>} : memref<4x8x1xf32, #tpu.memory_space<vmem>>, vector<1x8x1xf32>,
    %c0_39 = arith.constant 0 : index
    %c8 = arith.constant 8 : index
    %63 = vector.load %arg11[%c0_39, %c8] : memref<8x32xf32, #tpu.memory_space<vmem>>, vector<8x8xf32>
    %64 = vector.broadcast %50 : vector<8x1xf32> to vector<8x8xf32>
    %65 = arith.mulf %64, %63 : vector<8x8xf32>
    %66 = vector.extract_strided_slice %8 {offsets = [0, 8], sizes = [8, 8], strides = [1, 1]} : vector<8x32xf32> to vector<8x8xf32>
    %cst_40 = arith.constant dense<0.000000e+00> : vector<8x8xf32>
    %67 = tpu.matmul %53, %66, %cst_40 {dimension_numbers = #tpu.dot_dimension_numbers<[1], [0], [0], [1], [0, 0, 1, 1], [], []>} : vector<8x8xf32>, vector<8x8xf32>, vector<8x8xf32> -> vector<8x8xf32>
    %68 = arith.addf %65, %67 : vector<8x8xf32>
    %c0_41 = arith.constant 0 : index
    %c8_42 = arith.constant 8 : index
    %69 = vector.load %arg11[%c0_41, %c8_42] : memref<8x32xf32, #tpu.memory_space<vmem>>, vector<8x8xf32>
    tpu.vector_store %arg11[%c0_41, %c8_42], %68 {strides = array<i32>} : memref<8x32xf32, #tpu.memory_space<vmem>>, vector<8x8xf32>,
    %c1_43 = arith.constant 1 : index
    %c0_44 = arith.constant 0 : index
    %c0_45 = arith.constant 0 : index
    %70 = vector.load %arg9[%c1_43, %c0_44, %c0_45] : memref<4x8x1xf32, #tpu.memory_space<vmem>>, vector<1x8x1xf32>
    %71 = vector.shape_cast %70 : vector<1x8x1xf32> to vector<8x1xf32>
    %72 = vector.shape_cast %48 : vector<8x1xf32> to vector<1x8x1xf32>
    tpu.vector_store %arg9[%c1_43, %c0_44, %c0_45], %72 {strides = array<i32>} : memref<4x8x1xf32, #tpu.memory_space<vmem>>, vector<1x8x1xf32>,
    %73 = vector.extract_strided_slice %4 {offsets = [0, 16], sizes = [8, 8], strides = [1, 1]} : vector<8x32xf32> to vector<8x8xf32>
    %74 = vector.extract_strided_slice %6 {offsets = [0, 16], sizes = [8, 8], strides = [1, 1]} : vector<8x32xf32> to vector<8x8xf32>
    %cst_46 = arith.constant dense<0.000000e+00> : vector<8x8xf32>
    %75 = tpu.matmul %73, %74, %cst_46 {dimension_numbers = #tpu.dot_dimension_numbers<[1], [1], [0], [0], [0, 0, 1, 0], [], []>} : vector<8x8xf32>, vector<8x8xf32>, vector<8x8xf32> -> vector<8x8xf32>
    %c2 = arith.constant 2 : index
    %c0_47 = arith.constant 0 : index
    %c0_48 = arith.constant 0 : index
    %76 = vector.load %arg9[%c2, %c0_47, %c0_48] : memref<4x8x1xf32, #tpu.memory_space<vmem>>, vector<1x8x1xf32>
    %77 = vector.shape_cast %76 : vector<1x8x1xf32> to vector<8x1xf32>
    %cst_49 = arith.constant dense<0xFF800000> : vector<8xf32>
    %78 = vector.multi_reduction <maximumf>, %75, %cst_49 [1] : vector<8x8xf32> to vector<8xf32>
    %79 = vector.shape_cast %78 : vector<8xf32> to vector<8x1xf32>
    %80 = arith.maximumf %77, %79 : vector<8x1xf32>
    %81 = arith.subf %77, %80 : vector<8x1xf32>
    %82 = math.exp %81 : vector<8x1xf32>
    %83 = vector.broadcast %80 : vector<8x1xf32> to vector<8x8xf32>
    %84 = arith.subf %75, %83 : vector<8x8xf32>
    %85 = math.exp %84 : vector<8x8xf32>
    %c2_50 = arith.constant 2 : index
    %c0_51 = arith.constant 0 : index
    %c0_52 = arith.constant 0 : index
    %86 = vector.load %arg10[%c2_50, %c0_51, %c0_52] : memref<4x8x1xf32, #tpu.memory_space<vmem>>, vector<1x8x1xf32>
    %87 = vector.shape_cast %86 : vector<1x8x1xf32> to vector<8x1xf32>
    %88 = arith.mulf %82, %87 : vector<8x1xf32>
    %cst_53 = arith.constant dense<0.000000e+00> : vector<8xf32>
    %89 = vector.multi_reduction <add>, %85, %cst_53 [1] : vector<8x8xf32> to vector<8xf32>
    %90 = vector.shape_cast %89 : vector<8xf32> to vector<8x1xf32>
    %91 = arith.addf %88, %90 : vector<8x1xf32>
    %c2_54 = arith.constant 2 : index
    %c0_55 = arith.constant 0 : index
    %c0_56 = arith.constant 0 : index
    %92 = vector.load %arg10[%c2_54, %c0_55, %c0_56] : memref<4x8x1xf32, #tpu.memory_space<vmem>>, vector<1x8x1xf32>
    %93 = vector.shape_cast %92 : vector<1x8x1xf32> to vector<8x1xf32>
    %94 = vector.shape_cast %91 : vector<8x1xf32> to vector<1x8x1xf32>
    tpu.vector_store %arg10[%c2_54, %c0_55, %c0_56], %94 {strides = array<i32>} : memref<4x8x1xf32, #tpu.memory_space<vmem>>, vector<1x8x1xf32>,
    %c0_57 = arith.constant 0 : index
    %c16 = arith.constant 16 : index
    %95 = vector.load %arg11[%c0_57, %c16] : memref<8x32xf32, #tpu.memory_space<vmem>>, vector<8x8xf32>
    %96 = vector.broadcast %82 : vector<8x1xf32> to vector<8x8xf32>
    %97 = arith.mulf %96, %95 : vector<8x8xf32>
    %98 = vector.extract_strided_slice %8 {offsets = [0, 16], sizes = [8, 8], strides = [1, 1]} : vector<8x32xf32> to vector<8x8xf32>
    %cst_58 = arith.constant dense<0.000000e+00> : vector<8x8xf32>
    %99 = tpu.matmul %85, %98, %cst_58 {dimension_numbers = #tpu.dot_dimension_numbers<[1], [0], [0], [1], [0, 0, 1, 1], [], []>} : vector<8x8xf32>, vector<8x8xf32>, vector<8x8xf32> -> vector<8x8xf32>
    %100 = arith.addf %97, %99 : vector<8x8xf32>
    %c0_59 = arith.constant 0 : index
    %c16_60 = arith.constant 16 : index
    %101 = vector.load %arg11[%c0_59, %c16_60] : memref<8x32xf32, #tpu.memory_space<vmem>>, vector<8x8xf32>
    tpu.vector_store %arg11[%c0_59, %c16_60], %100 {strides = array<i32>} : memref<8x32xf32, #tpu.memory_space<vmem>>, vector<8x8xf32>,
    %c2_61 = arith.constant 2 : index
    %c0_62 = arith.constant 0 : index
    %c0_63 = arith.constant 0 : index
    %102 = vector.load %arg9[%c2_61, %c0_62, %c0_63] : memref<4x8x1xf32, #tpu.memory_space<vmem>>, vector<1x8x1xf32>
    %103 = vector.shape_cast %102 : vector<1x8x1xf32> to vector<8x1xf32>
    %104 = vector.shape_cast %80 : vector<8x1xf32> to vector<1x8x1xf32>
    tpu.vector_store %arg9[%c2_61, %c0_62, %c0_63], %104 {strides = array<i32>} : memref<4x8x1xf32, #tpu.memory_space<vmem>>, vector<1x8x1xf32>,
    %105 = vector.extract_strided_slice %4 {offsets = [0, 24], sizes = [8, 8], strides = [1, 1]} : vector<8x32xf32> to vector<8x8xf32>
    %106 = vector.extract_strided_slice %6 {offsets = [0, 24], sizes = [8, 8], strides = [1, 1]} : vector<8x32xf32> to vector<8x8xf32>
    %cst_64 = arith.constant dense<0.000000e+00> : vector<8x8xf32>
    %107 = tpu.matmul %105, %106, %cst_64 {dimension_numbers = #tpu.dot_dimension_numbers<[1], [1], [0], [0], [0, 0, 1, 0], [], []>} : vector<8x8xf32>, vector<8x8xf32>, vector<8x8xf32> -> vector<8x8xf32>
    %c3 = arith.constant 3 : index
    %c0_65 = arith.constant 0 : index
    %c0_66 = arith.constant 0 : index
    %108 = vector.load %arg9[%c3, %c0_65, %c0_66] : memref<4x8x1xf32, #tpu.memory_space<vmem>>, vector<1x8x1xf32>
    %109 = vector.shape_cast %108 : vector<1x8x1xf32> to vector<8x1xf32>
    %cst_67 = arith.constant dense<0xFF800000> : vector<8xf32>
    %110 = vector.multi_reduction <maximumf>, %107, %cst_67 [1] : vector<8x8xf32> to vector<8xf32>
    %111 = vector.shape_cast %110 : vector<8xf32> to vector<8x1xf32>
    %112 = arith.maximumf %109, %111 : vector<8x1xf32>
    %113 = arith.subf %109, %112 : vector<8x1xf32>
    %114 = math.exp %113 : vector<8x1xf32>
    %115 = vector.broadcast %112 : vector<8x1xf32> to vector<8x8xf32>
    %116 = arith.subf %107, %115 : vector<8x8xf32>
    %117 = math.exp %116 : vector<8x8xf32>
    %c3_68 = arith.constant 3 : index
    %c0_69 = arith.constant 0 : index
    %c0_70 = arith.constant 0 : index
    %118 = vector.load %arg10[%c3_68, %c0_69, %c0_70] : memref<4x8x1xf32, #tpu.memory_space<vmem>>, vector<1x8x1xf32>
    %119 = vector.shape_cast %118 : vector<1x8x1xf32> to vector<8x1xf32>
    %120 = arith.mulf %114, %119 : vector<8x1xf32>
    %cst_71 = arith.constant dense<0.000000e+00> : vector<8xf32>
    %121 = vector.multi_reduction <add>, %117, %cst_71 [1] : vector<8x8xf32> to vector<8xf32>
    %122 = vector.shape_cast %121 : vector<8xf32> to vector<8x1xf32>
    %123 = arith.addf %120, %122 : vector<8x1xf32>
    %c3_72 = arith.constant 3 : index
    %c0_73 = arith.constant 0 : index
    %c0_74 = arith.constant 0 : index
    %124 = vector.load %arg10[%c3_72, %c0_73, %c0_74] : memref<4x8x1xf32, #tpu.memory_space<vmem>>, vector<1x8x1xf32>
    %125 = vector.shape_cast %124 : vector<1x8x1xf32> to vector<8x1xf32>
    %126 = vector.shape_cast %123 : vector<8x1xf32> to vector<1x8x1xf32>
    tpu.vector_store %arg10[%c3_72, %c0_73, %c0_74], %126 {strides = array<i32>} : memref<4x8x1xf32, #tpu.memory_space<vmem>>, vector<1x8x1xf32>,
    %c0_75 = arith.constant 0 : index
    %c24 = arith.constant 24 : index
    %127 = vector.load %arg11[%c0_75, %c24] : memref<8x32xf32, #tpu.memory_space<vmem>>, vector<8x8xf32>
    %128 = vector.broadcast %114 : vector<8x1xf32> to vector<8x8xf32>
    %129 = arith.mulf %128, %127 : vector<8x8xf32>
    %130 = vector.extract_strided_slice %8 {offsets = [0, 24], sizes = [8, 8], strides = [1, 1]} : vector<8x32xf32> to vector<8x8xf32>
    %cst_76 = arith.constant dense<0.000000e+00> : vector<8x8xf32>
    %131 = tpu.matmul %117, %130, %cst_76 {dimension_numbers = #tpu.dot_dimension_numbers<[1], [0], [0], [1], [0, 0, 1, 1], [], []>} : vector<8x8xf32>, vector<8x8xf32>, vector<8x8xf32> -> vector<8x8xf32>
    %132 = arith.addf %129, %131 : vector<8x8xf32>
    %c0_77 = arith.constant 0 : index
    %c24_78 = arith.constant 24 : index
    %133 = vector.load %arg11[%c0_77, %c24_78] : memref<8x32xf32, #tpu.memory_space<vmem>>, vector<8x8xf32>
    tpu.vector_store %arg11[%c0_77, %c24_78], %132 {strides = array<i32>} : memref<8x32xf32, #tpu.memory_space<vmem>>, vector<8x8xf32>,
    %c3_79 = arith.constant 3 : index
    %c0_80 = arith.constant 0 : index
    %c0_81 = arith.constant 0 : index
    %134 = vector.load %arg9[%c3_79, %c0_80, %c0_81] : memref<4x8x1xf32, #tpu.memory_space<vmem>>, vector<1x8x1xf32>
    %135 = vector.shape_cast %134 : vector<1x8x1xf32> to vector<8x1xf32>
    %136 = vector.shape_cast %112 : vector<8x1xf32> to vector<1x8x1xf32>
    tpu.vector_store %arg9[%c3_79, %c0_80, %c0_81], %136 {strides = array<i32>} : memref<4x8x1xf32, #tpu.memory_space<vmem>>, vector<1x8x1xf32>,
    %c0_i32_82 = arith.constant 0 : i32
    %137 = arith.cmpi eq, %arg2, %c0_i32_82 : i32
    %138 = arith.extui %137 : i1 to i32
    %c0_i32_83 = arith.constant 0 : i32
    %139 = arith.cmpi ne, %138, %c0_i32_83 : i32
    scf.if %139 {
      %c0_84 = arith.constant 0 : index
      %c0_85 = arith.constant 0 : index
      %140 = vector.load %arg11[%c0_84, %c0_85] : memref<8x32xf32, #tpu.memory_space<vmem>>, vector<8x8xf32>
      %c0_86 = arith.constant 0 : index
      %c0_87 = arith.constant 0 : index
      %c0_88 = arith.constant 0 : index
      %141 = vector.load %arg10[%c0_86, %c0_87, %c0_88] : memref<4x8x1xf32, #tpu.memory_space<vmem>>, vector<1x8x1xf32>
      %142 = vector.shape_cast %141 : vector<1x8x1xf32> to vector<8x1xf32>
      %143 = tpu.reciprocal %142 {approx = true} : vector<8x1xf32> -> vector<8x1xf32>
      %144 = vector.broadcast %143 : vector<8x1xf32> to vector<8x8xf32>
      %145 = arith.mulf %140, %144 : vector<8x8xf32>
      %c0_89 = arith.constant 0 : index
      %c0_90 = arith.constant 0 : index
      %146 = vector.load %arg11[%c0_89, %c0_90] : memref<8x32xf32, #tpu.memory_space<vmem>>, vector<8x8xf32>
      tpu.vector_store %arg11[%c0_89, %c0_90], %145 {strides = array<i32>} : memref<8x32xf32, #tpu.memory_space<vmem>>, vector<8x8xf32>,
      %c0_91 = arith.constant 0 : index
      %c8_92 = arith.constant 8 : index
      %147 = vector.load %arg11[%c0_91, %c8_92] : memref<8x32xf32, #tpu.memory_space<vmem>>, vector<8x8xf32>
      %c1_93 = arith.constant 1 : index
      %c0_94 = arith.constant 0 : index
      %c0_95 = arith.constant 0 : index
      %148 = vector.load %arg10[%c1_93, %c0_94, %c0_95] : memref<4x8x1xf32, #tpu.memory_space<vmem>>, vector<1x8x1xf32>
      %149 = vector.shape_cast %148 : vector<1x8x1xf32> to vector<8x1xf32>
      %150 = tpu.reciprocal %149 {approx = true} : vector<8x1xf32> -> vector<8x1xf32>
      %151 = vector.broadcast %150 : vector<8x1xf32> to vector<8x8xf32>
      %152 = arith.mulf %147, %151 : vector<8x8xf32>
      %c0_96 = arith.constant 0 : index
      %c8_97 = arith.constant 8 : index
      %153 = vector.load %arg11[%c0_96, %c8_97] : memref<8x32xf32, #tpu.memory_space<vmem>>, vector<8x8xf32>
      tpu.vector_store %arg11[%c0_96, %c8_97], %152 {strides = array<i32>} : memref<8x32xf32, #tpu.memory_space<vmem>>, vector<8x8xf32>,
      %c0_98 = arith.constant 0 : index
      %c16_99 = arith.constant 16 : index
      %154 = vector.load %arg11[%c0_98, %c16_99] : memref<8x32xf32, #tpu.memory_space<vmem>>, vector<8x8xf32>
      %c2_100 = arith.constant 2 : index
      %c0_101 = arith.constant 0 : index
      %c0_102 = arith.constant 0 : index
      %155 = vector.load %arg10[%c2_100, %c0_101, %c0_102] : memref<4x8x1xf32, #tpu.memory_space<vmem>>, vector<1x8x1xf32>
      %156 = vector.shape_cast %155 : vector<1x8x1xf32> to vector<8x1xf32>
      %157 = tpu.reciprocal %156 {approx = true} : vector<8x1xf32> -> vector<8x1xf32>
      %158 = vector.broadcast %157 : vector<8x1xf32> to vector<8x8xf32>
      %159 = arith.mulf %154, %158 : vector<8x8xf32>
      %c0_103 = arith.constant 0 : index
      %c16_104 = arith.constant 16 : index
      %160 = vector.load %arg11[%c0_103, %c16_104] : memref<8x32xf32, #tpu.memory_space<vmem>>, vector<8x8xf32>
      tpu.vector_store %arg11[%c0_103, %c16_104], %159 {strides = array<i32>} : memref<8x32xf32, #tpu.memory_space<vmem>>, vector<8x8xf32>,
      %c0_105 = arith.constant 0 : index
      %c24_106 = arith.constant 24 : index
      %161 = vector.load %arg11[%c0_105, %c24_106] : memref<8x32xf32, #tpu.memory_space<vmem>>, vector<8x8xf32>
      %c3_107 = arith.constant 3 : index
      %c0_108 = arith.constant 0 : index
      %c0_109 = arith.constant 0 : index
      %162 = vector.load %arg10[%c3_107, %c0_108, %c0_109] : memref<4x8x1xf32, #tpu.memory_space<vmem>>, vector<1x8x1xf32>
      %163 = vector.shape_cast %162 : vector<1x8x1xf32> to vector<8x1xf32>
      %164 = tpu.reciprocal %163 {approx = true} : vector<8x1xf32> -> vector<8x1xf32>
      %165 = vector.broadcast %164 : vector<8x1xf32> to vector<8x8xf32>
      %166 = arith.mulf %161, %165 : vector<8x8xf32>
      %c0_110 = arith.constant 0 : index
      %c24_111 = arith.constant 24 : index
      %167 = vector.load %arg11[%c0_110, %c24_111] : memref<8x32xf32, #tpu.memory_space<vmem>>, vector<8x8xf32>
      tpu.vector_store %arg11[%c0_110, %c24_111], %166 {strides = array<i32>} : memref<8x32xf32, #tpu.memory_space<vmem>>, vector<8x8xf32>,
      %c0_112 = arith.constant 0 : index
      %c0_113 = arith.constant 0 : index
      %168 = vector.load %arg11[%c0_112, %c0_113] : memref<8x32xf32, #tpu.memory_space<vmem>>, vector<8x32xf32>
      %c0_114 = arith.constant 0 : index
      %c0_115 = arith.constant 0 : index
      %169 = vector.load %arg6[%c0_114, %c0_115] : memref<32x16xf32, #tpu.memory_space<vmem>>, vector<32x16xf32>
      %cst_116 = arith.constant dense<0.000000e+00> : vector<8x16xf32>
      %170 = tpu.matmul %168, %169, %cst_116 {dimension_numbers = #tpu.dot_dimension_numbers<[1], [0], [0], [1], [0, 0, 1, 1], [], []>} : vector<8x32xf32>, vector<32x16xf32>, vector<8x16xf32> -> vector<8x16xf32>
      %c0_117 = arith.constant 0 : index
      %c0_118 = arith.constant 0 : index
      %171 = vector.load %arg7[%c0_117, %c0_118] : memref<1x16xf32, #tpu.memory_space<vmem>>, vector<1x16xf32>
      %172 = vector.broadcast %171 : vector<1x16xf32> to vector<8x16xf32>
      %173 = arith.addf %170, %172 : vector<8x16xf32>
      %c0_119 = arith.constant 0 : index
      %c0_120 = arith.constant 0 : index
      %c0_121 = arith.constant 0 : index
      %174 = vector.load %arg8[%c0_119, %c0_120, %c0_121] : memref<1x8x16xf32, #tpu.memory_space<vmem>>, vector<1x8x16xf32>
      %175 = vector.shape_cast %174 : vector<1x8x16xf32> to vector<8x16xf32>
      %176 = vector.shape_cast %173 : vector<8x16xf32> to vector<1x8x16xf32>
      tpu.vector_store %arg8[%c0_119, %c0_120, %c0_121], %176 {strides = array<i32>} : memref<1x8x16xf32, #tpu.memory_space<vmem>>, vector<1x8x16xf32>,
    } else {
    }
    return
  }
  func.func @transform_0(%arg0: i32, %arg1: i32, %arg2: i32) -> (i32, i32, i32) {
    %c0_i32 = arith.constant 0 : i32
    %c0_i32_0 = arith.constant 0 : i32
    return %arg0, %arg1, %c0_i32 : i32, i32, i32
  }
  func.func @transform_1(%arg0: i32, %arg1: i32, %arg2: i32) -> (i32, i32, i32) {
    %c0_i32 = arith.constant 0 : i32
    %c0_i32_0 = arith.constant 0 : i32
    return %arg0, %arg2, %c0_i32 : i32, i32, i32
  }
  func.func @transform_2(%arg0: i32, %arg1: i32, %arg2: i32) -> (i32, i32, i32) {
    %c0_i32 = arith.constant 0 : i32
    %c0_i32_0 = arith.constant 0 : i32
    return %arg0, %arg2, %c0_i32 : i32, i32, i32
  }
  func.func @transform_3(%arg0: i32, %arg1: i32, %arg2: i32) -> (i32, i32) {
    %c0_i32 = arith.constant 0 : i32
    %c0_i32_0 = arith.constant 0 : i32
    %c0_i32_1 = arith.constant 0 : i32
    return %c0_i32, %c0_i32_0 : i32, i32
  }
  func.func @transform_4(%arg0: i32, %arg1: i32, %arg2: i32) -> (i32, i32) {
    %c0_i32 = arith.constant 0 : i32
    %c0_i32_0 = arith.constant 0 : i32
    %c0_i32_1 = arith.constant 0 : i32
    return %c0_i32, %c0_i32_0 : i32, i32
  }
  func.func @transform_5(%arg0: i32, %arg1: i32, %arg2: i32) -> (i32, i32, i32) {
    %c0_i32 = arith.constant 0 : i32
    %c0_i32_0 = arith.constant 0 : i32
    return %arg0, %arg1, %c0_i32 : i32, i32, i32
  }
}

</mosaic_0001>

<llo_original>
// kernel: tpu_custom_call.1
$region0: #{tpu_custom_call.1}
  #allocation0 [shape = 'u32[]', space=smem, size = 0x4, offset = 0x4, fixed_abs, tag = 'smem constant byte address 0x4 - core index']
  #allocation1 [shape = 'u32[144,128]{1,0:T(1,128)}', space=vmem, size = 0x12000, scoped, tag = 'internal scratch']
  #allocation2 [shape = 'f32[4,8,1]{2,1,0:T(8,128)}', space=vmem, size = 0x4000, scoped, tag = 'scratch operand']
  #allocation3 [shape = 'f32[4,8,1]{2,1,0:T(8,128)}', space=vmem, size = 0x4000, scoped, tag = 'scratch operand']
  #allocation4 [shape = 'f32[8,32]{1,0:T(8,128)}', space=vmem, size = 0x1000, scoped, tag = 'scratch operand']
  %s0 = inlined_call_operand.vmem [shape: f32[2,8,32], index: 0, kind: input, shape index: {}]
  %s1 = inlined_call_operand.vmem [shape: f32[2,8,32], index: 1, kind: input, shape index: {}]
  %s2 = inlined_call_operand.vmem [shape: f32[2,8,32], index: 2, kind: input, shape index: {}]
  %s3 = inlined_call_operand.vmem [shape: f32[32,16], index: 3, kind: input, shape index: {}]
  %s4 = inlined_call_operand.vmem [shape: f32[1,16], index: 4, kind: input, shape index: {}]
  %s5 = inlined_call_operand.hbm [shape: f32[2,8,16], index: 5, kind: output, shape index: {}]
  %s6 = sld [smem:[#allocation0]]
  $region61: #{tpu_custom_call.1} parent=0
    _
  %s8 = ssub.s32 1, %s6
  %s9 = scalar_select 0, %s8, %s6
  $region1: #{tpu_custom_call.1} parent=0
    #allocation5 [shape = 'u8[8192]{0}', space=vmem, size = 0x2000, scoped, tag = 'output window, operand 0']
    #allocation6 [shape = 's32[2]{0}', space=sflag, size = 0x8, scoped, tag = 'scoped memory for tpu_custom_call.1']
    %10 = vsyncpa [#allocation6], 0
    %s11 = scalar_lea.sflag [#allocation6], 1
    %12 = vsyncpa %s11, 0
    loop: start=0, step=1, limit=4
    $region2: #{tpu_custom_call.1} parent=1 // loop_pre_header
      _
    $region3: #{tpu_custom_call.1} parent=1 // loop_header
      %s14 = sphi 0, %s18
      %p15 = scmp.ge.s32.totalorder %s14, 4
      %s21 = sphi 0, %s40
      %s22 = sphi 0, %s36
      %s23 = sphi 0, %s32
      %s24 = sphi 0, %s21
      %s25 = sphi 0, %s22
      %s26 = sphi 0, %s23
      %s27 = sphi 0, %s24
      %s28 = sphi 0, %s25
      %s29 = sphi 0, %s26
      %s45 = sphi 0, %s47
      %s48 = sphi 0, %s45
      %s49 = sphi 0, %s48
      %s65 = sphi 0, %s49
      %s73 = sphi 0, %s75
      %s76 = sphi 0, %s73
      %s77 = sphi 0, %s76
      %s93 = sphi 0, %s77
      %s101 = sphi 0, %s103
      %s104 = sphi 0, %s101
      %s105 = sphi 0, %s104
      %s121 = sphi 0, %s105
      %s125 = sphi 0, %s125
      %s127 = sphi 0, %s125
      %s128 = sphi 0, %s127
      %s142 = sphi 0, %s128
      %s146 = sphi 0, %s146
      %s148 = sphi 0, %s146
      %s149 = sphi 0, %s148
      %s163 = sphi 0, %s149
      %s171 = sphi 0, %s173
      %s174 = sphi 0, %s171
      %s175 = sphi 0, %s174
      %s191 = sphi 0, %s175
    $region4: #{tpu_custom_call.1} parent=1 // loop_header_branch
      %17 = sbr.rel (%p15) target = $region8
    $region5: #{tpu_custom_call.1} parent=1 // loop_body
      %s19 = ssub.s32 %s14, 1
      %s20 = ssub.s32 %s14, 2
      %s30 = sadd.s32 1, %s23
      %p31 = scmp.ge.s32.totalorder %s30, 1
      %s32 = scalar_select %p31, 0, %s30
      %s33 = sadd.s32 1, %s22
      %s34 = scalar_select %p31, %s33, %s22
      %p35 = scmp.ge.s32.totalorder %s34, 1
      %s36 = scalar_select %p35, 0, %s34
      %s37 = sadd.s32 1, %s21
      %s38 = scalar_select %p35, %s37, %s21
      %p39 = scmp.ge.s32.totalorder %s38, 2
      %s40 = scalar_select %p39, 0, %s38
      %s41 = ssub.s32 %s21, %s40
      %s42 = ssub.s32 %s22, %s36
      %s43 = sor.u32 %s41, %s42
      %p44 = scmp.eq.s32.totalorder %s43, 0
      %s46 = sadd.s32 %s45, 1
      %s47 = scalar_select %p44, %s45, %s46
      %p50 = pneg %p44
      %p51 = scmp.eq.s32.totalorder %s14, 1
      %p52 = por %p50, %p51
      %p53 = scmp.ne.s32.totalorder %s45, %s48
      %p54 = scmp.eq.s32.totalorder %s14, 0
      %p55 = por %p53, %p54
      %p56 = scmp.ne.s32.totalorder %s45, %s48
      %p57 = scmp.eq.s32.totalorder %s19, 1
      %p58 = por %p56, %p57
      %p59 = scmp.ne.s32.totalorder %s48, %s49
      %p60 = scmp.eq.s32.totalorder %s19, 0
      %p61 = por %p59, %p60
      %p62 = scmp.ne.s32.totalorder %s48, %s49
      %p63 = scmp.eq.s32.totalorder %s20, 1
      %p64 = por %p62, %p63
      %p66 = scmp.ne.s32.totalorder %s49, %s65
      %p67 = scmp.eq.s32.totalorder %s20, 0
      %p68 = por %p66, %p67
      %s69 = ssub.s32 %s21, %s40
      %s70 = ssub.s32 %s23, %s32
      %s71 = sor.u32 %s69, %s70
      %p72 = scmp.eq.s32.totalorder %s71, 0
      %s74 = sadd.s32 %s73, 1
      %s75 = scalar_select %p72, %s73, %s74
      %p78 = pneg %p72
      %p79 = scmp.eq.s32.totalorder %s14, 1
      %p80 = por %p78, %p79
      %p81 = scmp.ne.s32.totalorder %s73, %s76
      %p82 = scmp.eq.s32.totalorder %s14, 0
      %p83 = por %p81, %p82
      %p84 = scmp.ne.s32.totalorder %s73, %s76
      %p85 = scmp.eq.s32.totalorder %s19, 1
      %p86 = por %p84, %p85
      %p87 = scmp.ne.s32.totalorder %s76, %s77
      %p88 = scmp.eq.s32.totalorder %s19, 0
      %p89 = por %p87, %p88
      %p90 = scmp.ne.s32.totalorder %s76, %s77
      %p91 = scmp.eq.s32.totalorder %s20, 1
      %p92 = por %p90, %p91
      %p94 = scmp.ne.s32.totalorder %s77, %s93
      %p95 = scmp.eq.s32.totalorder %s20, 0
      %p96 = por %p94, %p95
      %s97 = ssub.s32 %s21, %s40
      %s98 = ssub.s32 %s23, %s32
      %s99 = sor.u32 %s97, %s98
      %p100 = scmp.eq.s32.totalorder %s99, 0
      %s102 = sadd.s32 %s101, 1
      %s103 = scalar_select %p100, %s101, %s102
      %p106 = pneg %p100
      %p107 = scmp.eq.s32.totalorder %s14, 1
      %p108 = por %p106, %p107
      %p109 = scmp.ne.s32.totalorder %s101, %s104
      %p110 = scmp.eq.s32.totalorder %s14, 0
      %p111 = por %p109, %p110
      %p112 = scmp.ne.s32.totalorder %s101, %s104
      %p113 = scmp.eq.s32.totalorder %s19, 1
      %p114 = por %p112, %p113
      %p115 = scmp.ne.s32.totalorder %s104, %s105
      %p116 = scmp.eq.s32.totalorder %s19, 0
      %p117 = por %p115, %p116
      %p118 = scmp.ne.s32.totalorder %s104, %s105
      %p119 = scmp.eq.s32.totalorder %s20, 1
      %p120 = por %p118, %p119
      %p122 = scmp.ne.s32.totalorder %s105, %s121
      %p123 = scmp.eq.s32.totalorder %s20, 0
      %p124 = por %p122, %p123
      %s126 = sadd.s32 %s125, 1
      %p129 = scmp.eq.s32.totalorder %s14, 1
      %p130 = scmp.ne.s32.totalorder %s125, %s127
      %p131 = scmp.eq.s32.totalorder %s14, 0
      %p132 = por %p130, %p131
      %p133 = scmp.ne.s32.totalorder %s125, %s127
      %p134 = scmp.eq.s32.totalorder %s19, 1
      %p135 = por %p133, %p134
      %p136 = scmp.ne.s32.totalorder %s127, %s128
      %p137 = scmp.eq.s32.totalorder %s19, 0
      %p138 = por %p136, %p137
      %p139 = scmp.ne.s32.totalorder %s127, %s128
      %p140 = scmp.eq.s32.totalorder %s20, 1
      %p141 = por %p139, %p140
      %p143 = scmp.ne.s32.totalorder %s128, %s142
      %p144 = scmp.eq.s32.totalorder %s20, 0
      %p145 = por %p143, %p144
      %s147 = sadd.s32 %s146, 1
      %p150 = scmp.eq.s32.totalorder %s14, 1
      %p151 = scmp.ne.s32.totalorder %s146, %s148
      %p152 = scmp.eq.s32.totalorder %s14, 0
      %p153 = por %p151, %p152
      %p154 = scmp.ne.s32.totalorder %s146, %s148
      %p155 = scmp.eq.s32.totalorder %s19, 1
      %p156 = por %p154, %p155
      %p157 = scmp.ne.s32.totalorder %s148, %s149
      %p158 = scmp.eq.s32.totalorder %s19, 0
      %p159 = por %p157, %p158
      %p160 = scmp.ne.s32.totalorder %s148, %s149
      %p161 = scmp.eq.s32.totalorder %s20, 1
      %p162 = por %p160, %p161
      %p164 = scmp.ne.s32.totalorder %s149, %s163
      %p165 = scmp.eq.s32.totalorder %s20, 0
      %p166 = por %p164, %p165
      %s167 = ssub.s32 %s21, %s40
      %s168 = ssub.s32 %s22, %s36
      %s169 = sor.u32 %s167, %s168
      %p170 = scmp.eq.s32.totalorder %s169, 0
      %s172 = sadd.s32 %s171, 1
      %s173 = scalar_select %p170, %s171, %s172
      %p176 = pneg %p170
      %p177 = scmp.eq.s32.totalorder %s14, 1
      %p178 = por %p176, %p177
      %p179 = scmp.ne.s32.totalorder %s171, %s174
      %p180 = scmp.eq.s32.totalorder %s14, 0
      %p181 = por %p179, %p180
      %p182 = scmp.ne.s32.totalorder %s171, %s174
      %p183 = scmp.eq.s32.totalorder %s19, 1
      %p184 = por %p182, %p183
      %p185 = scmp.ne.s32.totalorder %s174, %s175
      %p186 = scmp.eq.s32.totalorder %s19, 0
      %p187 = por %p185, %p186
      %p188 = scmp.ne.s32.totalorder %s174, %s175
      %p189 = scmp.eq.s32.totalorder %s20, 1
      %p190 = por %p188, %p189
      %p192 = scmp.ne.s32.totalorder %s175, %s191
      %p193 = scmp.eq.s32.totalorder %s20, 0
      %p194 = por %p192, %p193
      %p195 = scmp.le.s32.totalorder 1, %s14
      %p196 = scmp.lt.s32.totalorder %s14, 3
      %p197 = pnand %p195, %p196
      %p198 = pneg %p197
      // Predicated region
      $region9: #{tpu_custom_call.1} parent=5 // pred_check
        _
      $region10: #{tpu_custom_call.1} parent=5 // pred_check_branch
        %200 = sbr.rel (%p197) target = $region12
      $region11: #{tpu_custom_call.1} parent=5 // pred_region
        %s201 = ssub.s32 %s14, 1
        // Predicated region
        $region13: #{tpu_custom_call.1} parent=11 // pred_check
          %p202 = pneg %p138
        $region14: #{tpu_custom_call.1} parent=11 // pred_check_branch
          %204 = sbr.rel (%p202) target = $region16
        $region15: #{tpu_custom_call.1} parent=11 // pred_region
          _
        $region16: #{tpu_custom_call.1} parent=11 // pred_fallthru
          _
        // Predicated region
        $region17: #{tpu_custom_call.1} parent=11 // pred_check
          %p205 = pneg %p159
        $region18: #{tpu_custom_call.1} parent=11 // pred_check_branch
          %207 = sbr.rel (%p205) target = $region20
        $region19: #{tpu_custom_call.1} parent=11 // pred_region
          _
        $region20: #{tpu_custom_call.1} parent=11 // pred_fallthru
          _
      $region12: #{tpu_custom_call.1} parent=5 // pred_fallthru
        _
      %p208 = scmp.lt.s32.totalorder %s14, 2
      // Predicated region
      $region21: #{tpu_custom_call.1} parent=5 // pred_check
        %p209 = pneg %p208
      $region22: #{tpu_custom_call.1} parent=5 // pred_check_branch
        %211 = sbr.rel (%p209) target = $region24
      $region23: #{tpu_custom_call.1} parent=5 // pred_region
        // Predicated region
        $region25: #{tpu_custom_call.1} parent=23 // pred_check
          %p212 = pneg %p55
        $region26: #{tpu_custom_call.1} parent=23 // pred_check_branch
          %214 = sbr.rel (%p212) target = $region28
        $region27: #{tpu_custom_call.1} parent=23 // pred_region
          %p215 = scmp.lt.s32.totalorder %s21, 1
          %s216 = scalar_select %p215, %s21, 1
          %p217 = scmp.lt.s32.totalorder %s22, 0
          %s218 = scalar_select %p217, %s22, 0
          %s219 = sadd.s32 %s218, %s216
          %s220 = smul.addr %s219, 8
          %s221 = scalar_lea.vmem %s0, %s220
        $region28: #{tpu_custom_call.1} parent=23 // pred_fallthru
          _
        // Predicated region
        $region29: #{tpu_custom_call.1} parent=23 // pred_check
          %p222 = pneg %p83
        $region30: #{tpu_custom_call.1} parent=23 // pred_check_branch
          %224 = sbr.rel (%p222) target = $region32
        $region31: #{tpu_custom_call.1} parent=23 // pred_region
          %p225 = scmp.lt.s32.totalorder %s21, 1
          %s226 = scalar_select %p225, %s21, 1
          %p227 = scmp.lt.s32.totalorder %s23, 0
          %s228 = scalar_select %p227, %s23, 0
          %s229 = sadd.s32 %s228, %s226
          %s230 = smul.addr %s229, 8
          %s231 = scalar_lea.vmem %s1, %s230
        $region32: #{tpu_custom_call.1} parent=23 // pred_fallthru
          _
        // Predicated region
        $region33: #{tpu_custom_call.1} parent=23 // pred_check
          %p232 = pneg %p111
        $region34: #{tpu_custom_call.1} parent=23 // pred_check_branch
          %234 = sbr.rel (%p232) target = $region36
        $region35: #{tpu_custom_call.1} parent=23 // pred_region
          %p235 = scmp.lt.s32.totalorder %s21, 1
          %s236 = scalar_select %p235, %s21, 1
          %p237 = scmp.lt.s32.totalorder %s23, 0
          %s238 = scalar_select %p237, %s23, 0
          %s239 = sadd.s32 %s238, %s236
          %s240 = smul.addr %s239, 8
          %s241 = scalar_lea.vmem %s2, %s240
        $region36: #{tpu_custom_call.1} parent=23 // pred_fallthru
          _
      $region24: #{tpu_custom_call.1} parent=5 // pred_fallthru
        _
      %p242 = scmp.le.s32.totalorder 1, %s14
      %p243 = scmp.lt.s32.totalorder %s14, 3
      %p244 = pnand %p242, %p243
      %p245 = pneg %p244
      // Predicated region
      $region37: #{tpu_custom_call.1} parent=5 // pred_check
        _
      $region38: #{tpu_custom_call.1} parent=5 // pred_check_branch
        %247 = sbr.rel (%p244) target = $region40
      $region39: #{tpu_custom_call.1} parent=5 // pred_region
        %s248 = ssub.s32 %s14, 1
        %p249 = scmp.lt.s32.totalorder %s24, 1
        %s250 = scalar_select %p249, %s24, 1
        %p251 = scmp.lt.s32.totalorder %s25, 0
        %s252 = scalar_select %p251, %s25, 0
        %s253 = sadd.s32 %s252, %s250
        %s254 = smul.addr %s253, 8
        %s255 = scalar_lea.vmem %s0, %s254
        %p256 = pneg %p61
        %p257 = pneg %p58
        %p258 = scmp.lt.s32.totalorder %s24, 1
        %s259 = scalar_select %p258, %s24, 1
        %p260 = scmp.lt.s32.totalorder %s26, 0
        %s261 = scalar_select %p260, %s26, 0
        %s262 = sadd.s32 %s261, %s259
        %s263 = smul.addr %s262, 8
        %s264 = scalar_lea.vmem %s1, %s263
        %p265 = pneg %p89
        %p266 = pneg %p86
        %p267 = scmp.lt.s32.totalorder %s24, 1
        %s268 = scalar_select %p267, %s24, 1
        %p269 = scmp.lt.s32.totalorder %s26, 0
        %s270 = scalar_select %p269, %s26, 0
        %s271 = sadd.s32 %s270, %s268
        %s272 = smul.addr %s271, 8
        %s273 = scalar_lea.vmem %s2, %s272
        %p274 = pneg %p117
        %p275 = pneg %p114
        %p276 = pneg %p138
        %p277 = pneg %p135
        %p278 = pneg %p159
        %p279 = pneg %p156
        %p280 = pneg %p187
        %p281 = pneg %p184
        %s282 = sand.u32 %s174, 1
        %s283 = scalar_lea.sflag [#allocation6], %s282
        %s284 = sand.u32 %s174, 1
        %s285 = smul.addr %s284, 8
        %s286 = scalar_lea.vmem [#allocation5], %s285
        %p287 = scmp.lt.s32.totalorder %s24, 1
        %s288 = scalar_select %p287, %s24, 1
        %p289 = scmp.lt.s32.totalorder %s25, 0
        %s290 = scalar_select %p289, %s25, 0
        %s291 = sadd.s32 %s290, %s288
        %s292 = smul.addr %s291, 8
        %s293 = scalar_lea.vmem %s0, %s292
        %p294 = scmp.lt.s32.totalorder %s24, 1
        %s295 = scalar_select %p294, %s24, 1
        %p296 = scmp.lt.s32.totalorder %s26, 0
        %s297 = scalar_select %p296, %s26, 0
        %s298 = sadd.s32 %s297, %s295
        %s299 = smul.addr %s298, 8
        %s300 = scalar_lea.vmem %s1, %s299
        %p301 = scmp.lt.s32.totalorder %s24, 1
        %s302 = scalar_select %p301, %s24, 1
        %p303 = scmp.lt.s32.totalorder %s26, 0
        %s304 = scalar_select %p303, %s26, 0
        %s305 = sadd.s32 %s304, %s302
        %s306 = smul.addr %s305, 8
        %s307 = scalar_lea.vmem %s2, %s306
        %p308 = scmp.eq.s32.totalorder %s26, 0
        // Predicated region
        $region41: #{tpu_custom_call.1} parent=39 // pred_check
          %p309 = pneg %p308
        $region42: #{tpu_custom_call.1} parent=39 // pred_check_branch
          %311 = sbr.rel (%p309) target = $region44
        $region43: #{tpu_custom_call.1} parent=39 // pred_region
          %vm312 = vcmask 7168
          %313 = vst.msk [vmem:[#allocation2] sm:$0xff] %vm312, -inf
          %314 = vst.msk [vmem:[#allocation2 + $0x8] sm:$0xff] %vm312, -inf
          %315 = vst.msk [vmem:[#allocation2 + $0x10] sm:$0xff] %vm312, -inf
          %316 = vst.msk [vmem:[#allocation2 + $0x18] sm:$0xff] %vm312, -inf
          %317 = vst.msk [vmem:[#allocation3] sm:$0xff] %vm312, 0.0
          %318 = vst.msk [vmem:[#allocation3 + $0x8] sm:$0xff] %vm312, 0.0
          %319 = vst.msk [vmem:[#allocation3 + $0x10] sm:$0xff] %vm312, 0.0
          %320 = vst.msk [vmem:[#allocation3 + $0x18] sm:$0xff] %vm312, 0.0
          %vm321 = vcmask 261120
          %322 = vst.msk [vmem:[#allocation4] sm:$0xff] %vm321, 0.0
        $region44: #{tpu_custom_call.1} parent=39 // pred_fallthru
          _
        %v323 = vld [vmem:[%s293] sm:$0xff]
        %v324 = vld [vmem:[%s300] sm:$0xff]
        %v325 = vld [vmem:[%s307] sm:$0xff]
        %vm326 = vcmask 64512
        %v328 = vsel %vm326, %v323, 0
        %v331 = vsel %vm326, %v324, 0
        %333 = vmatprep.subr.mxu0 0.0
        %334 = vmatpush1.xpose.msra.mxu0 %v331
        %335 = vmatprep.subr.mxu0 0.0
        %336 = vmatpush1.xpose.msra.mxu0 0.0
        %337 = vmatprep.subr.mxu0 0.0
        %338 = vmatpush1.xpose.msra.mxu0 0.0
        %339 = vmatprep.subr.mxu0 0.0
        %340 = vmatpush1.xpose.msra.mxu0 0.0
        %341 = vmatprep.subr.mxu0 0.0
        %342 = vmatpush1.xpose.msra.mxu0 0.0
        %343 = vmatprep.subr.mxu0 0.0
        %344 = vmatpush1.xpose.msra.mxu0 0.0
        %345 = vmatprep.subr.mxu0 0.0
        %346 = vmatpush1.xpose.msra.mxu0 0.0
        %347 = vmatprep.subr.mxu0 0.0
        %348 = vmatpush1.xpose.msra.mxu0 0.0
        %349 = vmatprep.subr.mxu0 0.0
        %350 = vmatpush1.xpose.msra.mxu0 0.0
        %351 = vmatprep.subr.mxu0 0.0
        %352 = vmatpush1.xpose.msra.mxu0 0.0
        %353 = vmatprep.subr.mxu0 0.0
        %354 = vmatpush1.xpose.msra.mxu0 0.0
        %355 = vmatprep.subr.mxu0 0.0
        %356 = vmatpush1.xpose.msra.mxu0 0.0
        %357 = vmatprep.subr.mxu0 0.0
        %358 = vmatpush1.xpose.msra.mxu0 0.0
        %359 = vmatprep.subr.mxu0 0.0
        %360 = vmatpush1.xpose.msra.mxu0 0.0
        %361 = vmatprep.subr.mxu0 0.0
        %362 = vmatpush1.xpose.msra.mxu0 0.0
        %363 = vmatprep.subr.mxu0 0.0
        %364 = vmatpush1.xpose.msra.mxu0 0.0
        %365 = vmatprep.subr.mxu0 0.0
        %366 = vmatpush1.xpose.msra.mxu0 0.0
        %367 = vmatprep.subr.mxu0 0.0
        %368 = vmatpush1.xpose.msra.mxu0 0.0
        %369 = vmatprep.subr.mxu0 0.0
        %370 = vmatpush1.xpose.msra.mxu0 0.0
        %371 = vmatprep.subr.mxu0 0.0
        %372 = vmatpush1.xpose.msra.mxu0 0.0
        %373 = vmatprep.subr.mxu0 0.0
        %374 = vmatpush1.xpose.msra.mxu0 0.0
        %375 = vmatprep.subr.mxu0 0.0
        %376 = vmatpush1.xpose.msra.mxu0 0.0
        %377 = vmatprep.subr.mxu0 0.0
        %378 = vmatpush1.xpose.msra.mxu0 0.0
        %379 = vmatprep.subr.mxu0 0.0
        %380 = vmatpush1.xpose.msra.mxu0 0.0
        %381 = vmatprep.subr.mxu0 0.0
        %382 = vmatpush1.xpose.msra.mxu0 0.0
        %383 = vmatprep.subr.mxu0 0.0
        %384 = vmatpush1.xpose.msra.mxu0 0.0
        %385 = vmatprep.subr.mxu0 0.0
        %386 = vmatpush1.xpose.msra.mxu0 0.0
        %387 = vmatprep.subr.mxu0 0.0
        %388 = vmatpush1.xpose.msra.mxu0 0.0
        %389 = vmatprep.subr.mxu0 0.0
        %390 = vmatpush1.xpose.msra.mxu0 0.0
        %391 = vmatprep.subr.mxu0 0.0
        %392 = vmatpush1.xpose.msra.mxu0 0.0
        %393 = vmatprep.subr.mxu0 0.0
        %394 = vmatpush1.xpose.msra.mxu0 0.0
        %395 = vmatprep.subr.mxu0 0.0
        %396 = vmatpush1.xpose.msra.mxu0 0.0
        %397 = vmatprep.mubr.f32.mxu0 0.0
        %398 = vmatmul.mubr.f32.gmra.mrb[0].mxu0 %v328
        %v399 = vpop.f32.mrb[0].mxu0
        %v400 = vadd.f32 0.0, %v399
        %v401 = vpop.f32.mrb[0].mxu0
        %402 = vdwg.mxu0
        %v403 = vld [vmem:[#allocation2] sm:$0xff]
        %v404 = vsel %vm326, %v400, -inf
        %405 = vmax.xlane.f32.xlu0 %v404
        %v406 = vpop.xlane.xlu0 %405
        %v407 = vmax.f32 %v403, %v406
        %v408 = vsub.f32 %v403, %v407
        %v409 = vmul.f32 %v408, 1.442695
        %v410 = vpow.pop %v409
        %412 = vset.pattern.permute.xlu0 0
        %413 = vperm.xlu0 %412, %v407
        %v414 = vpop.permute.xlu0 %413
        %v416 = vsub.f32 %v400, %v414
        %v417 = vmul.f32 %v416, 1.442695
        %v418 = vpow.pop %v417
        %v419 = vld [vmem:[#allocation3] sm:$0xff]
        %v420 = vmul.f32 %v410, %v419
        %v421 = vsel %vm326, %v418, 0.0
        %422 = vadd.xlane.f32.xlu0 %v421
        %v423 = vpop.xlane.xlu0 %422
        %v424 = vadd.f32 %v420, %v423
        %vm425 = vcmask 7168
        %426 = vst.msk [vmem:[#allocation3] sm:$0xff] %vm425, %v424
        %v427 = vld [vmem:[#allocation4] sm:$0xff]
        %429 = vset.pattern.permute.xlu0 0
        %430 = vperm.xlu0 %429, %v410
        %v431 = vpop.permute.xlu0 %430
        %v433 = vmul.f32 %v431, %v427
        %v435 = vsel %vm326, %v418, 0
        %437 = vmatprep.subr.mxu0 0.0
        %438 = vmatpush1.msra.mxu0 %v325
        %439 = vmatprep.subr.mxu0 0.0
        %440 = vmatpush1.msra.mxu0 0.0
        %441 = vmatprep.subr.mxu0 0.0
        %442 = vmatpush1.msra.mxu0 0.0
        %443 = vmatprep.subr.mxu0 0.0
        %444 = vmatpush1.msra.mxu0 0.0
        %445 = vmatprep.subr.mxu0 0.0
        %446 = vmatpush1.msra.mxu0 0.0
        %447 = vmatprep.subr.mxu0 0.0
        %448 = vmatpush1.msra.mxu0 0.0
        %449 = vmatprep.subr.mxu0 0.0
        %450 = vmatpush1.msra.mxu0 0.0
        %451 = vmatprep.subr.mxu0 0.0
        %452 = vmatpush1.msra.mxu0 0.0
        %453 = vmatprep.subr.mxu0 0.0
        %454 = vmatpush1.msra.mxu0 0.0
        %455 = vmatprep.subr.mxu0 0.0
        %456 = vmatpush1.msra.mxu0 0.0
        %457 = vmatprep.subr.mxu0 0.0
        %458 = vmatpush1.msra.mxu0 0.0
        %459 = vmatprep.subr.mxu0 0.0
        %460 = vmatpush1.msra.mxu0 0.0
        %461 = vmatprep.subr.mxu0 0.0
        %462 = vmatpush1.msra.mxu0 0.0
        %463 = vmatprep.subr.mxu0 0.0
        %464 = vmatpush1.msra.mxu0 0.0
        %465 = vmatprep.subr.mxu0 0.0
        %466 = vmatpush1.msra.mxu0 0.0
        %467 = vmatprep.subr.mxu0 0.0
        %468 = vmatpush1.msra.mxu0 0.0
        %469 = vmatprep.subr.mxu0 0.0
        %470 = vmatpush1.msra.mxu0 0.0
        %471 = vmatprep.subr.mxu0 0.0
        %472 = vmatpush1.msra.mxu0 0.0
        %473 = vmatprep.subr.mxu0 0.0
        %474 = vmatpush1.msra.mxu0 0.0
        %475 = vmatprep.subr.mxu0 0.0
        %476 = vmatpush1.msra.mxu0 0.0
        %477 = vmatprep.subr.mxu0 0.0
        %478 = vmatpush1.msra.mxu0 0.0
        %479 = vmatprep.subr.mxu0 0.0
        %480 = vmatpush1.msra.mxu0 0.0
        %481 = vmatprep.subr.mxu0 0.0
        %482 = vmatpush1.msra.mxu0 0.0
        %483 = vmatprep.subr.mxu0 0.0
        %484 = vmatpush1.msra.mxu0 0.0
        %485 = vmatprep.subr.mxu0 0.0
        %486 = vmatpush1.msra.mxu0 0.0
        %487 = vmatprep.subr.mxu0 0.0
        %488 = vmatpush1.msra.mxu0 0.0
        %489 = vmatprep.subr.mxu0 0.0
        %490 = vmatpush1.msra.mxu0 0.0
        %491 = vmatprep.subr.mxu0 0.0
        %492 = vmatpush1.msra.mxu0 0.0
        %493 = vmatprep.subr.mxu0 0.0
        %494 = vmatpush1.msra.mxu0 0.0
        %495 = vmatprep.subr.mxu0 0.0
        %496 = vmatpush1.msra.mxu0 0.0
        %497 = vmatprep.subr.mxu0 0.0
        %498 = vmatpush1.msra.mxu0 0.0
        %499 = vmatprep.subr.mxu0 0.0
        %500 = vmatpush1.msra.mxu0 0.0
        %501 = vmatprep.mubr.f32.mxu0 0.0
        %502 = vmatmul.mubr.f32.gmra.mrb[0].mxu0 %v435
        %v503 = vpop.f32.mrb[0].mxu0
        %v504 = vadd.f32 0.0, %v503
        %v505 = vpop.f32.mrb[0].mxu0
        %506 = vdwg.mxu0
        %v507 = vadd.f32 %v433, %v504
        %508 = vst.msk [vmem:[#allocation4] sm:$0xff] %vm326, %v507
        %509 = vst.msk [vmem:[#allocation2] sm:$0xff] %vm425, %v407
        %510 = vrot.lane.b32.xlu0 %v323, 120
        %v511 = vpop.permute.xlu0 %510
        %512 = vrot.lane.b32.xlu0 %v324, 120
        %v513 = vpop.permute.xlu0 %512
        %v514 = vsel %vm326, %v511, 0
        %v516 = vsel %vm326, %v513, 0
        %518 = vmatprep.subr.mxu0 0.0
        %519 = vmatpush1.xpose.msra.mxu0 %v516
        %520 = vmatprep.subr.mxu0 0.0
        %521 = vmatpush1.xpose.msra.mxu0 0.0
        %522 = vmatprep.subr.mxu0 0.0
        %523 = vmatpush1.xpose.msra.mxu0 0.0
        %524 = vmatprep.subr.mxu0 0.0
        %525 = vmatpush1.xpose.msra.mxu0 0.0
        %526 = vmatprep.subr.mxu0 0.0
        %527 = vmatpush1.xpose.msra.mxu0 0.0
        %528 = vmatprep.subr.mxu0 0.0
        %529 = vmatpush1.xpose.msra.mxu0 0.0
        %530 = vmatprep.subr.mxu0 0.0
        %531 = vmatpush1.xpose.msra.mxu0 0.0
        %532 = vmatprep.subr.mxu0 0.0
        %533 = vmatpush1.xpose.msra.mxu0 0.0
        %534 = vmatprep.subr.mxu0 0.0
        %535 = vmatpush1.xpose.msra.mxu0 0.0
        %536 = vmatprep.subr.mxu0 0.0
        %537 = vmatpush1.xpose.msra.mxu0 0.0
        %538 = vmatprep.subr.mxu0 0.0
        %539 = vmatpush1.xpose.msra.mxu0 0.0
        %540 = vmatprep.subr.mxu0 0.0
        %541 = vmatpush1.xpose.msra.mxu0 0.0
        %542 = vmatprep.subr.mxu0 0.0
        %543 = vmatpush1.xpose.msra.mxu0 0.0
        %544 = vmatprep.subr.mxu0 0.0
        %545 = vmatpush1.xpose.msra.mxu0 0.0
        %546 = vmatprep.subr.mxu0 0.0
        %547 = vmatpush1.xpose.msra.mxu0 0.0
        %548 = vmatprep.subr.mxu0 0.0
        %549 = vmatpush1.xpose.msra.mxu0 0.0
        %550 = vmatprep.subr.mxu0 0.0
        %551 = vmatpush1.xpose.msra.mxu0 0.0
        %552 = vmatprep.subr.mxu0 0.0
        %553 = vmatpush1.xpose.msra.mxu0 0.0
        %554 = vmatprep.subr.mxu0 0.0
        %555 = vmatpush1.xpose.msra.mxu0 0.0
        %556 = vmatprep.subr.mxu0 0.0
        %557 = vmatpush1.xpose.msra.mxu0 0.0
        %558 = vmatprep.subr.mxu0 0.0
        %559 = vmatpush1.xpose.msra.mxu0 0.0
        %560 = vmatprep.subr.mxu0 0.0
        %561 = vmatpush1.xpose.msra.mxu0 0.0
        %562 = vmatprep.subr.mxu0 0.0
        %563 = vmatpush1.xpose.msra.mxu0 0.0
        %564 = vmatprep.subr.mxu0 0.0
        %565 = vmatpush1.xpose.msra.mxu0 0.0
        %566 = vmatprep.subr.mxu0 0.0
        %567 = vmatpush1.xpose.msra.mxu0 0.0
        %568 = vmatprep.subr.mxu0 0.0
        %569 = vmatpush1.xpose.msra.mxu0 0.0
        %570 = vmatprep.subr.mxu0 0.0
        %571 = vmatpush1.xpose.msra.mxu0 0.0
        %572 = vmatprep.subr.mxu0 0.0
        %573 = vmatpush1.xpose.msra.mxu0 0.0
        %574 = vmatprep.subr.mxu0 0.0
        %575 = vmatpush1.xpose.msra.mxu0 0.0
        %576 = vmatprep.subr.mxu0 0.0
        %577 = vmatpush1.xpose.msra.mxu0 0.0
        %578 = vmatprep.subr.mxu0 0.0
        %579 = vmatpush1.xpose.msra.mxu0 0.0
        %580 = vmatprep.subr.mxu0 0.0
        %581 = vmatpush1.xpose.msra.mxu0 0.0
        %582 = vmatprep.mubr.f32.mxu0 0.0
        %583 = vmatmul.mubr.f32.gmra.mrb[0].mxu0 %v514
        %v584 = vpop.f32.mrb[0].mxu0
        %v585 = vadd.f32 0.0, %v584
        %v586 = vpop.f32.mrb[0].mxu0
        %587 = vdwg.mxu0
        %s588 = scalar_lea.vmem [#allocation2], 8
        %v589 = vld [vmem:[%s588] sm:$0xff]
        %v590 = vsel %vm326, %v585, -inf
        %591 = vmax.xlane.f32.xlu0 %v590
        %v592 = vpop.xlane.xlu0 %591
        %v593 = vmax.f32 %v589, %v592
        %v594 = vsub.f32 %v589, %v593
        %v595 = vmul.f32 %v594, 1.442695
        %v596 = vpow.pop %v595
        %598 = vset.pattern.permute.xlu0 0
        %599 = vperm.xlu0 %598, %v593
        %v600 = vpop.permute.xlu0 %599
        %v602 = vsub.f32 %v585, %v600
        %v603 = vmul.f32 %v602, 1.442695
        %v604 = vpow.pop %v603
        %s605 = scalar_lea.vmem [#allocation3], 8
        %v606 = vld [vmem:[%s605] sm:$0xff]
        %v607 = vmul.f32 %v596, %v606
        %v608 = vsel %vm326, %v604, 0.0
        %609 = vadd.xlane.f32.xlu0 %v608
        %v610 = vpop.xlane.xlu0 %609
        %v611 = vadd.f32 %v607, %v610
        %612 = vst.msk [vmem:[%s605] sm:$0xff] %vm425, %v611
        %v613 = vld [vmem:[#allocation4] sm:$0xff]
        %615 = vset.pattern.permute.xlu0 0
        %616 = vperm.xlu0 %615, %v596
        %v617 = vpop.permute.xlu0 %616
        %v619 = vmul.f32 %v617, %v613
        %621 = vrot.lane.b32.xlu0 %v325, 120
        %v622 = vpop.permute.xlu0 %621
        %v625 = vsel %vm326, %v604, 0
        %627 = vmatprep.subr.mxu0 0.0
        %628 = vmatpush1.msra.mxu0 %v622
        %629 = vmatprep.subr.mxu0 0.0
        %630 = vmatpush1.msra.mxu0 0.0
        %631 = vmatprep.subr.mxu0 0.0
        %632 = vmatpush1.msra.mxu0 0.0
        %633 = vmatprep.subr.mxu0 0.0
        %634 = vmatpush1.msra.mxu0 0.0
        %635 = vmatprep.subr.mxu0 0.0
        %636 = vmatpush1.msra.mxu0 0.0
        %637 = vmatprep.subr.mxu0 0.0
        %638 = vmatpush1.msra.mxu0 0.0
        %639 = vmatprep.subr.mxu0 0.0
        %640 = vmatpush1.msra.mxu0 0.0
        %641 = vmatprep.subr.mxu0 0.0
        %642 = vmatpush1.msra.mxu0 0.0
        %643 = vmatprep.subr.mxu0 0.0
        %644 = vmatpush1.msra.mxu0 0.0
        %645 = vmatprep.subr.mxu0 0.0
        %646 = vmatpush1.msra.mxu0 0.0
        %647 = vmatprep.subr.mxu0 0.0
        %648 = vmatpush1.msra.mxu0 0.0
        %649 = vmatprep.subr.mxu0 0.0
        %650 = vmatpush1.msra.mxu0 0.0
        %651 = vmatprep.subr.mxu0 0.0
        %652 = vmatpush1.msra.mxu0 0.0
        %653 = vmatprep.subr.mxu0 0.0
        %654 = vmatpush1.msra.mxu0 0.0
        %655 = vmatprep.subr.mxu0 0.0
        %656 = vmatpush1.msra.mxu0 0.0
        %657 = vmatprep.subr.mxu0 0.0
        %658 = vmatpush1.msra.mxu0 0.0
        %659 = vmatprep.subr.mxu0 0.0
        %660 = vmatpush1.msra.mxu0 0.0
        %661 = vmatprep.subr.mxu0 0.0
        %662 = vmatpush1.msra.mxu0 0.0
        %663 = vmatprep.subr.mxu0 0.0
        %664 = vmatpush1.msra.mxu0 0.0
        %665 = vmatprep.subr.mxu0 0.0
        %666 = vmatpush1.msra.mxu0 0.0
        %667 = vmatprep.subr.mxu0 0.0
        %668 = vmatpush1.msra.mxu0 0.0
        %669 = vmatprep.subr.mxu0 0.0
        %670 = vmatpush1.msra.mxu0 0.0
        %671 = vmatprep.subr.mxu0 0.0
        %672 = vmatpush1.msra.mxu0 0.0
        %673 = vmatprep.subr.mxu0 0.0
        %674 = vmatpush1.msra.mxu0 0.0
        %675 = vmatprep.subr.mxu0 0.0
        %676 = vmatpush1.msra.mxu0 0.0
        %677 = vmatprep.subr.mxu0 0.0
        %678 = vmatpush1.msra.mxu0 0.0
        %679 = vmatprep.subr.mxu0 0.0
        %680 = vmatpush1.msra.mxu0 0.0
        %681 = vmatprep.subr.mxu0 0.0
        %682 = vmatpush1.msra.mxu0 0.0
        %683 = vmatprep.subr.mxu0 0.0
        %684 = vmatpush1.msra.mxu0 0.0
        %685 = vmatprep.subr.mxu0 0.0
        %686 = vmatpush1.msra.mxu0 0.0
        %687 = vmatprep.subr.mxu0 0.0
        %688 = vmatpush1.msra.mxu0 0.0
        %689 = vmatprep.subr.mxu0 0.0
        %690 = vmatpush1.msra.mxu0 0.0
        %691 = vmatprep.mubr.f32.mxu0 0.0
        %692 = vmatmul.mubr.f32.gmra.mrb[0].mxu0 %v625
        %v693 = vpop.f32.mrb[0].mxu0
        %v694 = vadd.f32 0.0, %v693
        %v695 = vpop.f32.mrb[0].mxu0
        %696 = vdwg.mxu0
        %698 = vrot.lane.b32.xlu0 %v694, 8
        %v699 = vpop.permute.xlu0 %698
        %v701 = vadd.f32 %v619, %v699
        %vm702 = vcmask 130112
        %703 = vst.msk [vmem:[#allocation4] sm:$0xff] %vm702, %v701
        %704 = vst.msk [vmem:[%s588] sm:$0xff] %vm425, %v593
        %705 = vrot.lane.b32.xlu0 %v323, 112
        %v706 = vpop.permute.xlu0 %705
        %707 = vrot.lane.b32.xlu0 %v324, 112
        %v708 = vpop.permute.xlu0 %707
        %v709 = vsel %vm326, %v706, 0
        %v711 = vsel %vm326, %v708, 0
        %713 = vmatprep.subr.mxu0 0.0
        %714 = vmatpush1.xpose.msra.mxu0 %v711
        %715 = vmatprep.subr.mxu0 0.0
        %716 = vmatpush1.xpose.msra.mxu0 0.0
        %717 = vmatprep.subr.mxu0 0.0
        %718 = vmatpush1.xpose.msra.mxu0 0.0
        %719 = vmatprep.subr.mxu0 0.0
        %720 = vmatpush1.xpose.msra.mxu0 0.0
        %721 = vmatprep.subr.mxu0 0.0
        %722 = vmatpush1.xpose.msra.mxu0 0.0
        %723 = vmatprep.subr.mxu0 0.0
        %724 = vmatpush1.xpose.msra.mxu0 0.0
        %725 = vmatprep.subr.mxu0 0.0
        %726 = vmatpush1.xpose.msra.mxu0 0.0
        %727 = vmatprep.subr.mxu0 0.0
        %728 = vmatpush1.xpose.msra.mxu0 0.0
        %729 = vmatprep.subr.mxu0 0.0
        %730 = vmatpush1.xpose.msra.mxu0 0.0
        %731 = vmatprep.subr.mxu0 0.0
        %732 = vmatpush1.xpose.msra.mxu0 0.0
        %733 = vmatprep.subr.mxu0 0.0
        %734 = vmatpush1.xpose.msra.mxu0 0.0
        %735 = vmatprep.subr.mxu0 0.0
        %736 = vmatpush1.xpose.msra.mxu0 0.0
        %737 = vmatprep.subr.mxu0 0.0
        %738 = vmatpush1.xpose.msra.mxu0 0.0
        %739 = vmatprep.subr.mxu0 0.0
        %740 = vmatpush1.xpose.msra.mxu0 0.0
        %741 = vmatprep.subr.mxu0 0.0
        %742 = vmatpush1.xpose.msra.mxu0 0.0
        %743 = vmatprep.subr.mxu0 0.0
        %744 = vmatpush1.xpose.msra.mxu0 0.0
        %745 = vmatprep.subr.mxu0 0.0
        %746 = vmatpush1.xpose.msra.mxu0 0.0
        %747 = vmatprep.subr.mxu0 0.0
        %748 = vmatpush1.xpose.msra.mxu0 0.0
        %749 = vmatprep.subr.mxu0 0.0
        %750 = vmatpush1.xpose.msra.mxu0 0.0
        %751 = vmatprep.subr.mxu0 0.0
        %752 = vmatpush1.xpose.msra.mxu0 0.0
        %753 = vmatprep.subr.mxu0 0.0
        %754 = vmatpush1.xpose.msra.mxu0 0.0
        %755 = vmatprep.subr.mxu0 0.0
        %756 = vmatpush1.xpose.msra.mxu0 0.0
        %757 = vmatprep.subr.mxu0 0.0
        %758 = vmatpush1.xpose.msra.mxu0 0.0
        %759 = vmatprep.subr.mxu0 0.0
        %760 = vmatpush1.xpose.msra.mxu0 0.0
        %761 = vmatprep.subr.mxu0 0.0
        %762 = vmatpush1.xpose.msra.mxu0 0.0
        %763 = vmatprep.subr.mxu0 0.0
        %764 = vmatpush1.xpose.msra.mxu0 0.0
        %765 = vmatprep.subr.mxu0 0.0
        %766 = vmatpush1.xpose.msra.mxu0 0.0
        %767 = vmatprep.subr.mxu0 0.0
        %768 = vmatpush1.xpose.msra.mxu0 0.0
        %769 = vmatprep.subr.mxu0 0.0
        %770 = vmatpush1.xpose.msra.mxu0 0.0
        %771 = vmatprep.subr.mxu0 0.0
        %772 = vmatpush1.xpose.msra.mxu0 0.0
        %773 = vmatprep.subr.mxu0 0.0
        %774 = vmatpush1.xpose.msra.mxu0 0.0
        %775 = vmatprep.subr.mxu0 0.0
        %776 = vmatpush1.xpose.msra.mxu0 0.0
        %777 = vmatprep.mubr.f32.mxu0 0.0
        %778 = vmatmul.mubr.f32.gmra.mrb[0].mxu0 %v709
        %v779 = vpop.f32.mrb[0].mxu0
        %v780 = vadd.f32 0.0, %v779
        %v781 = vpop.f32.mrb[0].mxu0
        %782 = vdwg.mxu0
        %s783 = scalar_lea.vmem [#allocation2], 16
        %v784 = vld [vmem:[%s783] sm:$0xff]
        %v785 = vsel %vm326, %v780, -inf
        %786 = vmax.xlane.f32.xlu0 %v785
        %v787 = vpop.xlane.xlu0 %786
        %v788 = vmax.f32 %v784, %v787
        %v789 = vsub.f32 %v784, %v788
        %v790 = vmul.f32 %v789, 1.442695
        %v791 = vpow.pop %v790
        %793 = vset.pattern.permute.xlu0 0
        %794 = vperm.xlu0 %793, %v788
        %v795 = vpop.permute.xlu0 %794
        %v797 = vsub.f32 %v780, %v795
        %v798 = vmul.f32 %v797, 1.442695
        %v799 = vpow.pop %v798
        %s800 = scalar_lea.vmem [#allocation3], 16
        %v801 = vld [vmem:[%s800] sm:$0xff]
        %v802 = vmul.f32 %v791, %v801
        %v803 = vsel %vm326, %v799, 0.0
        %804 = vadd.xlane.f32.xlu0 %v803
        %v805 = vpop.xlane.xlu0 %804
        %v806 = vadd.f32 %v802, %v805
        %807 = vst.msk [vmem:[%s800] sm:$0xff] %vm425, %v806
        %v808 = vld [vmem:[#allocation4] sm:$0xff]
        %810 = vset.pattern.permute.xlu0 0
        %811 = vperm.xlu0 %810, %v791
        %v812 = vpop.permute.xlu0 %811
        %v814 = vmul.f32 %v812, %v808
        %815 = vrot.lane.b32.xlu0 %v325, 112
        %v816 = vpop.permute.xlu0 %815
        %v819 = vsel %vm326, %v799, 0
        %821 = vmatprep.subr.mxu0 0.0
        %822 = vmatpush1.msra.mxu0 %v816
        %823 = vmatprep.subr.mxu0 0.0
        %824 = vmatpush1.msra.mxu0 0.0
        %825 = vmatprep.subr.mxu0 0.0
        %826 = vmatpush1.msra.mxu0 0.0
        %827 = vmatprep.subr.mxu0 0.0
        %828 = vmatpush1.msra.mxu0 0.0
        %829 = vmatprep.subr.mxu0 0.0
        %830 = vmatpush1.msra.mxu0 0.0
        %831 = vmatprep.subr.mxu0 0.0
        %832 = vmatpush1.msra.mxu0 0.0
        %833 = vmatprep.subr.mxu0 0.0
        %834 = vmatpush1.msra.mxu0 0.0
        %835 = vmatprep.subr.mxu0 0.0
        %836 = vmatpush1.msra.mxu0 0.0
        %837 = vmatprep.subr.mxu0 0.0
        %838 = vmatpush1.msra.mxu0 0.0
        %839 = vmatprep.subr.mxu0 0.0
        %840 = vmatpush1.msra.mxu0 0.0
        %841 = vmatprep.subr.mxu0 0.0
        %842 = vmatpush1.msra.mxu0 0.0
        %843 = vmatprep.subr.mxu0 0.0
        %844 = vmatpush1.msra.mxu0 0.0
        %845 = vmatprep.subr.mxu0 0.0
        %846 = vmatpush1.msra.mxu0 0.0
        %847 = vmatprep.subr.mxu0 0.0
        %848 = vmatpush1.msra.mxu0 0.0
        %849 = vmatprep.subr.mxu0 0.0
        %850 = vmatpush1.msra.mxu0 0.0
        %851 = vmatprep.subr.mxu0 0.0
        %852 = vmatpush1.msra.mxu0 0.0
        %853 = vmatprep.subr.mxu0 0.0
        %854 = vmatpush1.msra.mxu0 0.0
        %855 = vmatprep.subr.mxu0 0.0
        %856 = vmatpush1.msra.mxu0 0.0
        %857 = vmatprep.subr.mxu0 0.0
        %858 = vmatpush1.msra.mxu0 0.0
        %859 = vmatprep.subr.mxu0 0.0
        %860 = vmatpush1.msra.mxu0 0.0
        %861 = vmatprep.subr.mxu0 0.0
        %862 = vmatpush1.msra.mxu0 0.0
        %863 = vmatprep.subr.mxu0 0.0
        %864 = vmatpush1.msra.mxu0 0.0
        %865 = vmatprep.subr.mxu0 0.0
        %866 = vmatpush1.msra.mxu0 0.0
        %867 = vmatprep.subr.mxu0 0.0
        %868 = vmatpush1.msra.mxu0 0.0
        %869 = vmatprep.subr.mxu0 0.0
        %870 = vmatpush1.msra.mxu0 0.0
        %871 = vmatprep.subr.mxu0 0.0
        %872 = vmatpush1.msra.mxu0 0.0
        %873 = vmatprep.subr.mxu0 0.0
        %874 = vmatpush1.msra.mxu0 0.0
        %875 = vmatprep.subr.mxu0 0.0
        %876 = vmatpush1.msra.mxu0 0.0
        %877 = vmatprep.subr.mxu0 0.0
        %878 = vmatpush1.msra.mxu0 0.0
        %879 = vmatprep.subr.mxu0 0.0
        %880 = vmatpush1.msra.mxu0 0.0
        %881 = vmatprep.subr.mxu0 0.0
        %882 = vmatpush1.msra.mxu0 0.0
        %883 = vmatprep.subr.mxu0 0.0
        %884 = vmatpush1.msra.mxu0 0.0
        %885 = vmatprep.mubr.f32.mxu0 0.0
        %886 = vmatmul.mubr.f32.gmra.mrb[0].mxu0 %v819
        %v887 = vpop.f32.mrb[0].mxu0
        %v888 = vadd.f32 0.0, %v887
        %v889 = vpop.f32.mrb[0].mxu0
        %890 = vdwg.mxu0
        %892 = vrot.lane.b32.xlu0 %v888, 16
        %v893 = vpop.permute.xlu0 %892
        %v895 = vadd.f32 %v814, %v893
        %vm896 = vcmask 195712
        %897 = vst.msk [vmem:[#allocation4] sm:$0xff] %vm896, %v895
        %898 = vst.msk [vmem:[%s783] sm:$0xff] %vm425, %v788
        %899 = vrot.lane.b32.xlu0 %v323, 104
        %v900 = vpop.permute.xlu0 %899
        %901 = vrot.lane.b32.xlu0 %v324, 104
        %v902 = vpop.permute.xlu0 %901
        %v903 = vsel %vm326, %v900, 0
        %v905 = vsel %vm326, %v902, 0
        %907 = vmatprep.subr.mxu0 0.0
        %908 = vmatpush1.xpose.msra.mxu0 %v905
        %909 = vmatprep.subr.mxu0 0.0
        %910 = vmatpush1.xpose.msra.mxu0 0.0
        %911 = vmatprep.subr.mxu0 0.0
        %912 = vmatpush1.xpose.msra.mxu0 0.0
        %913 = vmatprep.subr.mxu0 0.0
        %914 = vmatpush1.xpose.msra.mxu0 0.0
        %915 = vmatprep.subr.mxu0 0.0
        %916 = vmatpush1.xpose.msra.mxu0 0.0
        %917 = vmatprep.subr.mxu0 0.0
        %918 = vmatpush1.xpose.msra.mxu0 0.0
        %919 = vmatprep.subr.mxu0 0.0
        %920 = vmatpush1.xpose.msra.mxu0 0.0
        %921 = vmatprep.subr.mxu0 0.0
        %922 = vmatpush1.xpose.msra.mxu0 0.0
        %923 = vmatprep.subr.mxu0 0.0
        %924 = vmatpush1.xpose.msra.mxu0 0.0
        %925 = vmatprep.subr.mxu0 0.0
        %926 = vmatpush1.xpose.msra.mxu0 0.0
        %927 = vmatprep.subr.mxu0 0.0
        %928 = vmatpush1.xpose.msra.mxu0 0.0
        %929 = vmatprep.subr.mxu0 0.0
        %930 = vmatpush1.xpose.msra.mxu0 0.0
        %931 = vmatprep.subr.mxu0 0.0
        %932 = vmatpush1.xpose.msra.mxu0 0.0
        %933 = vmatprep.subr.mxu0 0.0
        %934 = vmatpush1.xpose.msra.mxu0 0.0
        %935 = vmatprep.subr.mxu0 0.0
        %936 = vmatpush1.xpose.msra.mxu0 0.0
        %937 = vmatprep.subr.mxu0 0.0
        %938 = vmatpush1.xpose.msra.mxu0 0.0
        %939 = vmatprep.subr.mxu0 0.0
        %940 = vmatpush1.xpose.msra.mxu0 0.0
        %941 = vmatprep.subr.mxu0 0.0
        %942 = vmatpush1.xpose.msra.mxu0 0.0
        %943 = vmatprep.subr.mxu0 0.0
        %944 = vmatpush1.xpose.msra.mxu0 0.0
        %945 = vmatprep.subr.mxu0 0.0
        %946 = vmatpush1.xpose.msra.mxu0 0.0
        %947 = vmatprep.subr.mxu0 0.0
        %948 = vmatpush1.xpose.msra.mxu0 0.0
        %949 = vmatprep.subr.mxu0 0.0
        %950 = vmatpush1.xpose.msra.mxu0 0.0
        %951 = vmatprep.subr.mxu0 0.0
        %952 = vmatpush1.xpose.msra.mxu0 0.0
        %953 = vmatprep.subr.mxu0 0.0
        %954 = vmatpush1.xpose.msra.mxu0 0.0
        %955 = vmatprep.subr.mxu0 0.0
        %956 = vmatpush1.xpose.msra.mxu0 0.0
        %957 = vmatprep.subr.mxu0 0.0
        %958 = vmatpush1.xpose.msra.mxu0 0.0
        %959 = vmatprep.subr.mxu0 0.0
        %960 = vmatpush1.xpose.msra.mxu0 0.0
        %961 = vmatprep.subr.mxu0 0.0
        %962 = vmatpush1.xpose.msra.mxu0 0.0
        %963 = vmatprep.subr.mxu0 0.0
        %964 = vmatpush1.xpose.msra.mxu0 0.0
        %965 = vmatprep.subr.mxu0 0.0
        %966 = vmatpush1.xpose.msra.mxu0 0.0
        %967 = vmatprep.subr.mxu0 0.0
        %968 = vmatpush1.xpose.msra.mxu0 0.0
        %969 = vmatprep.subr.mxu0 0.0
        %970 = vmatpush1.xpose.msra.mxu0 0.0
        %971 = vmatprep.mubr.f32.mxu0 0.0
        %972 = vmatmul.mubr.f32.gmra.mrb[0].mxu0 %v903
        %v973 = vpop.f32.mrb[0].mxu0
        %v974 = vadd.f32 0.0, %v973
        %v975 = vpop.f32.mrb[0].mxu0
        %976 = vdwg.mxu0
        %s977 = scalar_lea.vmem [#allocation2], 24
        %v978 = vld [vmem:[%s977] sm:$0xff]
        %v979 = vsel %vm326, %v974, -inf
        %980 = vmax.xlane.f32.xlu0 %v979
        %v981 = vpop.xlane.xlu0 %980
        %v982 = vmax.f32 %v978, %v981
        %v983 = vsub.f32 %v978, %v982
        %v984 = vmul.f32 %v983, 1.442695
        %v985 = vpow.pop %v984
        %987 = vset.pattern.permute.xlu0 0
        %988 = vperm.xlu0 %987, %v982
        %v989 = vpop.permute.xlu0 %988
        %v991 = vsub.f32 %v974, %v989
        %v992 = vmul.f32 %v991, 1.442695
        %v993 = vpow.pop %v992
        %s994 = scalar_lea.vmem [#allocation3], 24
        %v995 = vld [vmem:[%s994] sm:$0xff]
        %v996 = vmul.f32 %v985, %v995
        %v997 = vsel %vm326, %v993, 0.0
        %998 = vadd.xlane.f32.xlu0 %v997
        %v999 = vpop.xlane.xlu0 %998
        %v1000 = vadd.f32 %v996, %v999
        %1001 = vst.msk [vmem:[%s994] sm:$0xff] %vm425, %v1000
        %v1002 = vld [vmem:[#allocation4] sm:$0xff]
        %1004 = vset.pattern.permute.xlu0 0
        %1005 = vperm.xlu0 %1004, %v985
        %v1006 = vpop.permute.xlu0 %1005
        %v1008 = vmul.f32 %v1006, %v1002
        %1009 = vrot.lane.b32.xlu0 %v325, 104
        %v1010 = vpop.permute.xlu0 %1009
        %v1013 = vsel %vm326, %v993, 0
        %1015 = vmatprep.subr.mxu0 0.0
        %1016 = vmatpush1.msra.mxu0 %v1010
        %1017 = vmatprep.subr.mxu0 0.0
        %1018 = vmatpush1.msra.mxu0 0.0
        %1019 = vmatprep.subr.mxu0 0.0
        %1020 = vmatpush1.msra.mxu0 0.0
        %1021 = vmatprep.subr.mxu0 0.0
        %1022 = vmatpush1.msra.mxu0 0.0
        %1023 = vmatprep.subr.mxu0 0.0
        %1024 = vmatpush1.msra.mxu0 0.0
        %1025 = vmatprep.subr.mxu0 0.0
        %1026 = vmatpush1.msra.mxu0 0.0
        %1027 = vmatprep.subr.mxu0 0.0
        %1028 = vmatpush1.msra.mxu0 0.0
        %1029 = vmatprep.subr.mxu0 0.0
        %1030 = vmatpush1.msra.mxu0 0.0
        %1031 = vmatprep.subr.mxu0 0.0
        %1032 = vmatpush1.msra.mxu0 0.0
        %1033 = vmatprep.subr.mxu0 0.0
        %1034 = vmatpush1.msra.mxu0 0.0
        %1035 = vmatprep.subr.mxu0 0.0
        %1036 = vmatpush1.msra.mxu0 0.0
        %1037 = vmatprep.subr.mxu0 0.0
        %1038 = vmatpush1.msra.mxu0 0.0
        %1039 = vmatprep.subr.mxu0 0.0
        %1040 = vmatpush1.msra.mxu0 0.0
        %1041 = vmatprep.subr.mxu0 0.0
        %1042 = vmatpush1.msra.mxu0 0.0
        %1043 = vmatprep.subr.mxu0 0.0
        %1044 = vmatpush1.msra.mxu0 0.0
        %1045 = vmatprep.subr.mxu0 0.0
        %1046 = vmatpush1.msra.mxu0 0.0
        %1047 = vmatprep.subr.mxu0 0.0
        %1048 = vmatpush1.msra.mxu0 0.0
        %1049 = vmatprep.subr.mxu0 0.0
        %1050 = vmatpush1.msra.mxu0 0.0
        %1051 = vmatprep.subr.mxu0 0.0
        %1052 = vmatpush1.msra.mxu0 0.0
        %1053 = vmatprep.subr.mxu0 0.0
        %1054 = vmatpush1.msra.mxu0 0.0
        %1055 = vmatprep.subr.mxu0 0.0
        %1056 = vmatpush1.msra.mxu0 0.0
        %1057 = vmatprep.subr.mxu0 0.0
        %1058 = vmatpush1.msra.mxu0 0.0
        %1059 = vmatprep.subr.mxu0 0.0
        %1060 = vmatpush1.msra.mxu0 0.0
        %1061 = vmatprep.subr.mxu0 0.0
        %1062 = vmatpush1.msra.mxu0 0.0
        %1063 = vmatprep.subr.mxu0 0.0
        %1064 = vmatpush1.msra.mxu0 0.0
        %1065 = vmatprep.subr.mxu0 0.0
        %1066 = vmatpush1.msra.mxu0 0.0
        %1067 = vmatprep.subr.mxu0 0.0
        %1068 = vmatpush1.msra.mxu0 0.0
        %1069 = vmatprep.subr.mxu0 0.0
        %1070 = vmatpush1.msra.mxu0 0.0
        %1071 = vmatprep.subr.mxu0 0.0
        %1072 = vmatpush1.msra.mxu0 0.0
        %1073 = vmatprep.subr.mxu0 0.0
        %1074 = vmatpush1.msra.mxu0 0.0
        %1075 = vmatprep.subr.mxu0 0.0
        %1076 = vmatpush1.msra.mxu0 0.0
        %1077 = vmatprep.subr.mxu0 0.0
        %1078 = vmatpush1.msra.mxu0 0.0
        %1079 = vmatprep.mubr.f32.mxu0 0.0
        %1080 = vmatmul.mubr.f32.gmra.mrb[0].mxu0 %v1013
        %v1081 = vpop.f32.mrb[0].mxu0
        %v1082 = vadd.f32 0.0, %v1081
        %v1083 = vpop.f32.mrb[0].mxu0
        %1084 = vdwg.mxu0
        %1086 = vrot.lane.b32.xlu0 %v1082, 24
        %v1087 = vpop.permute.xlu0 %1086
        %v1089 = vadd.f32 %v1008, %v1087
        %vm1090 = vcmask 261312
        %1091 = vst.msk [vmem:[#allocation4] sm:$0xff] %vm1090, %v1089
        %1092 = vst.msk [vmem:[%s977] sm:$0xff] %vm425, %v982
        // Predicated region
        $region45: #{tpu_custom_call.1} parent=39 // pred_check
          %p1093 = pneg %p308
        $region46: #{tpu_custom_call.1} parent=39 // pred_check_branch
          %1095 = sbr.rel (%p1093) target = $region48
        $region47: #{tpu_custom_call.1} parent=39 // pred_region
          %v1096 = vld [vmem:[#allocation4] sm:$0xff]
          %v1097 = vld [vmem:[#allocation3] sm:$0xff]
          %v1098 = vrcp.pop %v1097
          %1100 = vset.pattern.permute.xlu0 0
          %1101 = vperm.xlu0 %1100, %v1098
          %v1102 = vpop.permute.xlu0 %1101
          %v1104 = vmul.f32 %v1096, %v1102
          %1105 = vst.msk [vmem:[#allocation4] sm:$0xff] %vm326, %v1104
          %v1106 = vld [vmem:[#allocation4] sm:$0xff]
          %v1107 = vld [vmem:[%s605] sm:$0xff]
          %v1108 = vrcp.pop %v1107
          %1110 = vset.pattern.permute.xlu0 0
          %1111 = vperm.xlu0 %1110, %v1108
          %v1112 = vpop.permute.xlu0 %1111
          %v1114 = vmul.f32 %v1106, %v1112
          %1115 = vst.msk [vmem:[#allocation4] sm:$0xff] %vm702, %v1114
          %v1116 = vld [vmem:[#allocation4] sm:$0xff]
          %v1117 = vld [vmem:[%s800] sm:$0xff]
          %v1118 = vrcp.pop %v1117
          %1120 = vset.pattern.permute.xlu0 0
          %1121 = vperm.xlu0 %1120, %v1118
          %v1122 = vpop.permute.xlu0 %1121
          %v1124 = vmul.f32 %v1116, %v1122
          %1125 = vst.msk [vmem:[#allocation4] sm:$0xff] %vm896, %v1124
          %v1126 = vld [vmem:[#allocation4] sm:$0xff]
          %v1127 = vld [vmem:[%s994] sm:$0xff]
          %v1128 = vrcp.pop %v1127
          %1130 = vset.pattern.permute.xlu0 0
          %1131 = vperm.xlu0 %1130, %v1128
          %v1132 = vpop.permute.xlu0 %1131
          %v1134 = vmul.f32 %v1126, %v1132
          %1135 = vst.msk [vmem:[#allocation4] sm:$0xff] %vm1090, %v1134
          %v1136 = vld [vmem:[#allocation4] sm:$0xff]
          %v1137 = vld [vmem:[%s3] sm:$0xff]
          %v1138 = vld [vmem:[%s3 + $0x8] sm:$0xff]
          %v1139 = vld [vmem:[%s3 + $0x10] sm:$0xff]
          %v1140 = vld [vmem:[%s3 + $0x18] sm:$0xff]
          %v1141 = vld [vmem:[%s4] sm:$0x1]
          %v1143 = vlaneseq
          %v1144 = vshrl.u32 %v1143, 7
          %v1145 = vsub.s32 0, %v1144
          %v1146 = vrot.slane %v1141, %v1145
          %vm1148 = vcmask 261120
          %v1150 = vsel %vm1148, %v1136, 0
          %1152 = vmatprep.subr.mxu0 0.0
          %1153 = vmatpush1.msra.mxu0 %v1137
          %1154 = vmatprep.subr.mxu0 0.0
          %1155 = vmatpush1.msra.mxu0 %v1138
          %1156 = vmatprep.subr.mxu0 0.0
          %1157 = vmatpush1.msra.mxu0 %v1139
          %1158 = vmatprep.subr.mxu0 0.0
          %1159 = vmatpush1.msra.mxu0 %v1140
          %1160 = vmatprep.subr.mxu0 0.0
          %1161 = vmatpush1.msra.mxu0 0.0
          %1162 = vmatprep.subr.mxu0 0.0
          %1163 = vmatpush1.msra.mxu0 0.0
          %1164 = vmatprep.subr.mxu0 0.0
          %1165 = vmatpush1.msra.mxu0 0.0
          %1166 = vmatprep.subr.mxu0 0.0
          %1167 = vmatpush1.msra.mxu0 0.0
          %1168 = vmatprep.subr.mxu0 0.0
          %1169 = vmatpush1.msra.mxu0 0.0
          %1170 = vmatprep.subr.mxu0 0.0
          %1171 = vmatpush1.msra.mxu0 0.0
          %1172 = vmatprep.subr.mxu0 0.0
          %1173 = vmatpush1.msra.mxu0 0.0
          %1174 = vmatprep.subr.mxu0 0.0
          %1175 = vmatpush1.msra.mxu0 0.0
          %1176 = vmatprep.subr.mxu0 0.0
          %1177 = vmatpush1.msra.mxu0 0.0
          %1178 = vmatprep.subr.mxu0 0.0
          %1179 = vmatpush1.msra.mxu0 0.0
          %1180 = vmatprep.subr.mxu0 0.0
          %1181 = vmatpush1.msra.mxu0 0.0
          %1182 = vmatprep.subr.mxu0 0.0
          %1183 = vmatpush1.msra.mxu0 0.0
          %1184 = vmatprep.subr.mxu0 0.0
          %1185 = vmatpush1.msra.mxu0 0.0
          %1186 = vmatprep.subr.mxu0 0.0
          %1187 = vmatpush1.msra.mxu0 0.0
          %1188 = vmatprep.subr.mxu0 0.0
          %1189 = vmatpush1.msra.mxu0 0.0
          %1190 = vmatprep.subr.mxu0 0.0
          %1191 = vmatpush1.msra.mxu0 0.0
          %1192 = vmatprep.subr.mxu0 0.0
          %1193 = vmatpush1.msra.mxu0 0.0
          %1194 = vmatprep.subr.mxu0 0.0
          %1195 = vmatpush1.msra.mxu0 0.0
          %1196 = vmatprep.subr.mxu0 0.0
          %1197 = vmatpush1.msra.mxu0 0.0
          %1198 = vmatprep.subr.mxu0 0.0
          %1199 = vmatpush1.msra.mxu0 0.0
          %1200 = vmatprep.subr.mxu0 0.0
          %1201 = vmatpush1.msra.mxu0 0.0
          %1202 = vmatprep.subr.mxu0 0.0
          %1203 = vmatpush1.msra.mxu0 0.0
          %1204 = vmatprep.subr.mxu0 0.0
          %1205 = vmatpush1.msra.mxu0 0.0
          %1206 = vmatprep.subr.mxu0 0.0
          %1207 = vmatpush1.msra.mxu0 0.0
          %1208 = vmatprep.subr.mxu0 0.0
          %1209 = vmatpush1.msra.mxu0 0.0
          %1210 = vmatprep.subr.mxu0 0.0
          %1211 = vmatpush1.msra.mxu0 0.0
          %1212 = vmatprep.subr.mxu0 0.0
          %1213 = vmatpush1.msra.mxu0 0.0
          %1214 = vmatprep.subr.mxu0 0.0
          %1215 = vmatpush1.msra.mxu0 0.0
          %1216 = vmatprep.mubr.f32.mxu0 0.0
          %1217 = vmatmul.mubr.f32.gmra.mrb[0].mxu0 %v1150
          %v1218 = vpop.f32.mrb[0].mxu0
          %v1219 = vadd.f32 %v1146, %v1218
          %v1220 = vpop.f32.mrb[0].mxu0
          %1221 = vdwg.mxu0
          %vm1222 = vcmask 130048
          %1223 = vst.msk [vmem:[%s286] sm:$0xff] %vm1222, %v1219
        $region48: #{tpu_custom_call.1} parent=39 // pred_fallthru
          _
        %s1224 = sand.u32 %s174, 1
        %s1225 = scalar_lea.sflag [#allocation6], %s1224
        %s1226 = sand.u32 %s174, 1
        %s1227 = smul.addr %s1226, 8
        %s1228 = scalar_lea.vmem [#allocation5], %s1227
        // Predicated region
        $region49: #{tpu_custom_call.1} parent=39 // pred_check
          %p1229 = pneg %p184
        $region50: #{tpu_custom_call.1} parent=39 // pred_check_branch
          %1231 = sbr.rel (%p1229) target = $region52
        $region51: #{tpu_custom_call.1} parent=39 // pred_region
          %s1233 = ssub.s32 128, 128
          %1234 = vsyncadd %s1225, %s1233
          %s1235 = sadd.s32 %s25, %s24
          %s1236 = smul.addr %s1235, 128
          %s1237 = scalar_lea.hbm %s5, %s1236
          %s1239 = sshll.u32 %s1228, 4
          %s1240 = int_to_ptr.vmem [resolvable:$true] %s1239
          %1242 = dma.vmem_to_hbm [thread:$0]  %s1240, 128, %s1237, %s1225
        $region52: #{tpu_custom_call.1} parent=39 // pred_fallthru
          _
      $region40: #{tpu_custom_call.1} parent=5 // pred_fallthru
        _
      %p1243 = scmp.le.s32.totalorder 2, %s14
      // Predicated region
      $region53: #{tpu_custom_call.1} parent=5 // pred_check
        %p1244 = pneg %p1243
      $region54: #{tpu_custom_call.1} parent=5 // pred_check_branch
        %1246 = sbr.rel (%p1244) target = $region56
      $region55: #{tpu_custom_call.1} parent=5 // pred_region
        %s1247 = ssub.s32 %s14, 2
        // Predicated region
        $region57: #{tpu_custom_call.1} parent=55 // pred_check
          %p1248 = pneg %p190
        $region58: #{tpu_custom_call.1} parent=55 // pred_check_branch
          %1250 = sbr.rel (%p1248) target = $region60
        $region59: #{tpu_custom_call.1} parent=55 // pred_region
          %s1251 = sand.u32 %s175, 1
          %s1252 = scalar_lea.sflag [#allocation6], %s1251
          %s1253 = sand.u32 %s175, 1
          %s1254 = smul.addr %s1253, 8
          %s1255 = scalar_lea.vmem [#allocation5], %s1254
          %1256 = dma.done %s1252, 128
        $region60: #{tpu_custom_call.1} parent=55 // pred_fallthru
          _
      $region56: #{tpu_custom_call.1} parent=5 // pred_fallthru
        _
    $region6: #{tpu_custom_call.1} parent=1 // loop_footer
      %s18 = sadd.s32 1, %s14
    $region7: #{tpu_custom_call.1} parent=1 // loop_footer_branch
      %13 = sbr.rel target = $region3
    $region8: #{tpu_custom_call.1} parent=1 // loop_exit
      _
    %1257 = vsyncpa [#allocation6], 1
    %s1258 = scalar_lea.sflag [#allocation6], 1
    %1259 = vsyncpa %s1258, 1

</llo_original>
